<compile_context>
chip_gen: v7x
topology: tpu7x:2x2x1
jax: 0.10.0
libtpu: 0.0.40
codegen_flags: <defaults>
</compile_context>

<pallas_src>
import functools

import jax
import jax.numpy as jnp
from jax.experimental import pallas as pl
from jax.experimental.pallas import tpu as pltpu

_SUBLANE = 8  # f32 sublane granularity


def addnet_kernel(x_ref, w1_ref, b1_ref, w2_ref, b2_ref, w3_ref, b3_ref,
                  out_ref, *, T, Bp):
    # Hoist the state-independent fc1: one MXU pass over all T*Bp rows,
    # bias fused so the recurrence only does the add + tanh.
    fc1_all = (jnp.dot(x_ref[...], w1_ref[...],
                       preferred_element_type=jnp.float32) + b1_ref[...])

    w2 = w2_ref[...]
    b2 = b2_ref[...]
    w3 = w3_ref[...]
    b3 = b3_ref[...]

    hs = w2.shape[0]
    out = w3.shape[1]

    # Recurrent state stays in vregs (3 small tiles, far below regalloc limits).
    h1 = jnp.zeros((Bp, hs), jnp.float32)
    h2 = jnp.zeros((Bp, hs), jnp.float32)
    h3 = jnp.zeros((Bp, out), jnp.float32)

    # T is a static Python int -> fully unrolled recurrence, indices static.
    # Bp is a multiple of 8, so each slice is sublane-aligned.
    for t in range(T):
        fc1_t = fc1_all[t * Bp:(t + 1) * Bp]
        h1 = jnp.tanh(h1 + fc1_t)
        # dropout -> identity (inference)
        h2 = jnp.tanh(h2 + jnp.dot(h1, w2, preferred_element_type=jnp.float32) + b2)
        h3 = jnp.tanh(h3 + jnp.dot(h2, w3, preferred_element_type=jnp.float32) + b3)

    out_ref[...] = h3.astype(out_ref.dtype)


def addnet_forward(data, w1, b1, w2, b2, w3, b3):
    T, B, inp = data.shape
    hs = w1.shape[1]
    out = w3.shape[1]

    # Pad batch to a multiple of the f32 sublane count so per-timestep slices
    # inside the kernel are sublane-aligned.  Padded rows are zeros and their
    # (throwaway) states never touch the real rows.
    Bp = ((B + _SUBLANE - 1) // _SUBLANE) * _SUBLANE
    if Bp != B:
        data_p = jnp.pad(data, ((0, 0), (0, Bp - B), (0, 0)))
    else:
        data_p = data

    # Present x as a single lane/sublane-dense 2D slab so fc1 is one MXU pass.
    x2d = data_p.reshape(T * Bp, inp)

    kernel = functools.partial(addnet_kernel, T=T, Bp=Bp)

    result = pl.pallas_call(
        kernel,
        out_shape=jax.ShapeDtypeStruct((Bp, out), jnp.float32),
        grid=(1,),  # single invocation: the whole recurrence is in-kernel
        in_specs=[
            pl.BlockSpec((T * Bp, inp), lambda i: (0, 0)),   # all timesteps of x
            pl.BlockSpec((inp, hs),     lambda i: (0, 0)),   # W1
            pl.BlockSpec((1, hs),       lambda i: (0, 0)),   # b1
            pl.BlockSpec((hs, hs),      lambda i: (0, 0)),   # W2
            pl.BlockSpec((1, hs),       lambda i: (0, 0)),   # b2
            pl.BlockSpec((hs, out),     lambda i: (0, 0)),   # W3
            pl.BlockSpec((1, out),      lambda i: (0, 0)),   # b3
        ],
        out_specs=pl.BlockSpec((Bp, out), lambda i: (0, 0)),
        compiler_params=pltpu.CompilerParams(
            dimension_semantics=("arbitrary",)),
    )(x2d, w1, b1, w2, b2, w3, b3)

    return result[:B]


def addnet_reference(data, w1, b1, w2, b2, w3, b3):
    T, B, _ = data.shape
    h1 = jnp.zeros((B, w1.shape[1]), jnp.float32)
    h2 = jnp.zeros((B, w2.shape[1]), jnp.float32)
    h3 = jnp.zeros((B, w3.shape[1]), jnp.float32)
    for t in range(T):
        x = data[t]
        h1 = jnp.tanh(h1 + x @ w1 + b1)
        h2 = jnp.tanh(h2 + h1 @ w2 + b2)
        h3 = jnp.tanh(h3 + h2 @ w3 + b3)
    return h3


if __name__ == "__main__":
    # Small shapes consistent with the module: seq T=8, batch B=4,
    # input_size=16, hidden_size=32, output_size=8.
    T, B, INP, HS, OUT = 8, 4, 16, 32, 8

    key = jax.random.PRNGKey(0)
    kd, k1, k2, k3, kb1, kb2, kb3 = jax.random.split(key, 7)

    data = jax.random.normal(kd, (T, B, INP), dtype=jnp.float32)

    # Deterministic synthetic parameters (nn.Linear shapes, stored transposed).
    w1 = jax.random.normal(k1, (INP, HS), dtype=jnp.float32) * 0.1
    b1 = jax.random.normal(kb1, (1, HS), dtype=jnp.float32) * 0.1
    w2 = jax.random.normal(k2, (HS, HS), dtype=jnp.float32) * 0.1
    b2 = jax.random.normal(kb2, (1, HS), dtype=jnp.float32) * 0.1
    w3 = jax.random.normal(k3, (HS, OUT), dtype=jnp.float32) * 0.1
    b3 = jax.random.normal(kb3, (1, OUT), dtype=jnp.float32) * 0.1

    out = addnet_forward(data, w1, b1, w2, b2, w3, b3)
    out = jax.block_until_ready(out)

    ref = addnet_reference(data, w1, b1, w2, b2, w3, b3)
    assert out.shape == (B, OUT)
    assert jnp.allclose(out, ref, atol=1e-5, rtol=1e-5), "mismatch vs reference"

    print("KERNEL_OK")
</pallas_src>

<mosaic_0001>
module attributes {stable_mosaic.version = 11 : i64} {
  func.func @addnet_kernel(%arg0: i32, %arg1: memref<64x16xf32, #tpu.memory_space<vmem>>, %arg2: memref<16x32xf32, #tpu.memory_space<vmem>>, %arg3: memref<1x32xf32, #tpu.memory_space<vmem>>, %arg4: memref<32x32xf32, #tpu.memory_space<vmem>>, %arg5: memref<1x32xf32, #tpu.memory_space<vmem>>, %arg6: memref<32x8xf32, #tpu.memory_space<vmem>>, %arg7: memref<1x8xf32, #tpu.memory_space<vmem>>, %arg8: memref<8x8xf32, #tpu.memory_space<vmem>>) attributes {dimension_semantics = [#tpu.dimension_semantics<arbitrary>], iteration_bounds = array<i64: 1>, scalar_prefetch = 0 : i64, scratch_operands = 0 : i64, tpu.core_type = #tpu.core_type<tc>, window_params = [{pipeline_mode = #tpu.pipeline_mode<synchronous>, transform_indices = @transform_0, window_bounds = array<i64: 64, 16>}, {pipeline_mode = #tpu.pipeline_mode<synchronous>, transform_indices = @transform_1, window_bounds = array<i64: 16, 32>}, {pipeline_mode = #tpu.pipeline_mode<synchronous>, transform_indices = @transform_2, window_bounds = array<i64: 1, 32>}, {pipeline_mode = #tpu.pipeline_mode<synchronous>, transform_indices = @transform_3, window_bounds = array<i64: 32, 32>}, {pipeline_mode = #tpu.pipeline_mode<synchronous>, transform_indices = @transform_4, window_bounds = array<i64: 1, 32>}, {pipeline_mode = #tpu.pipeline_mode<synchronous>, transform_indices = @transform_5, window_bounds = array<i64: 32, 8>}, {pipeline_mode = #tpu.pipeline_mode<synchronous>, transform_indices = @transform_6, window_bounds = array<i64: 1, 8>}, {pipeline_mode = #tpu.pipeline_mode<synchronous>, transform_indices = @transform_7, window_bounds = array<i64: 8, 8>}]} {
    %c0 = arith.constant 0 : index
    %c0_0 = arith.constant 0 : index
    %0 = vector.load %arg1[%c0, %c0_0] : memref<64x16xf32, #tpu.memory_space<vmem>>, vector<64x16xf32>
    %c0_1 = arith.constant 0 : index
    %c0_2 = arith.constant 0 : index
    %1 = vector.load %arg2[%c0_1, %c0_2] : memref<16x32xf32, #tpu.memory_space<vmem>>, vector<16x32xf32>
    %cst = arith.constant dense<0.000000e+00> : vector<64x32xf32>
    %2 = tpu.matmul %0, %1, %cst {dimension_numbers = #tpu.dot_dimension_numbers<[1], [0], [0], [1], [0, 0, 1, 1], [], []>} : vector<64x16xf32>, vector<16x32xf32>, vector<64x32xf32> -> vector<64x32xf32>
    %c0_3 = arith.constant 0 : index
    %c0_4 = arith.constant 0 : index
    %3 = vector.load %arg3[%c0_3, %c0_4] : memref<1x32xf32, #tpu.memory_space<vmem>>, vector<1x32xf32>
    %4 = vector.broadcast %3 : vector<1x32xf32> to vector<64x32xf32>
    %5 = arith.addf %2, %4 : vector<64x32xf32>
    %c0_5 = arith.constant 0 : index
    %c0_6 = arith.constant 0 : index
    %6 = vector.load %arg4[%c0_5, %c0_6] : memref<32x32xf32, #tpu.memory_space<vmem>>, vector<32x32xf32>
    %c0_7 = arith.constant 0 : index
    %c0_8 = arith.constant 0 : index
    %7 = vector.load %arg5[%c0_7, %c0_8] : memref<1x32xf32, #tpu.memory_space<vmem>>, vector<1x32xf32>
    %c0_9 = arith.constant 0 : index
    %c0_10 = arith.constant 0 : index
    %8 = vector.load %arg6[%c0_9, %c0_10] : memref<32x8xf32, #tpu.memory_space<vmem>>, vector<32x8xf32>
    %c0_11 = arith.constant 0 : index
    %c0_12 = arith.constant 0 : index
    %9 = vector.load %arg7[%c0_11, %c0_12] : memref<1x8xf32, #tpu.memory_space<vmem>>, vector<1x8xf32>
    %cst_13 = arith.constant 0.000000e+00 : f32
    %10 = vector.broadcast %cst_13 : f32 to vector<8x32xf32>
    %cst_14 = arith.constant 0.000000e+00 : f32
    %11 = vector.broadcast %cst_14 : f32 to vector<8x32xf32>
    %cst_15 = arith.constant 0.000000e+00 : f32
    %12 = vector.broadcast %cst_15 : f32 to vector<8x8xf32>
    %13 = vector.extract_strided_slice %5 {offsets = [0, 0], sizes = [8, 32], strides = [1, 1]} : vector<64x32xf32> to vector<8x32xf32>
    %14 = arith.addf %10, %13 : vector<8x32xf32>
    %15 = math.tanh %14 : vector<8x32xf32>
    %cst_16 = arith.constant dense<0.000000e+00> : vector<8x32xf32>
    %16 = tpu.matmul %15, %6, %cst_16 {dimension_numbers = #tpu.dot_dimension_numbers<[1], [0], [0], [1], [0, 0, 1, 1], [], []>} : vector<8x32xf32>, vector<32x32xf32>, vector<8x32xf32> -> vector<8x32xf32>
    %17 = arith.addf %11, %16 : vector<8x32xf32>
    %18 = vector.broadcast %7 : vector<1x32xf32> to vector<8x32xf32>
    %19 = arith.addf %17, %18 : vector<8x32xf32>
    %20 = math.tanh %19 : vector<8x32xf32>
    %cst_17 = arith.constant dense<0.000000e+00> : vector<8x8xf32>
    %21 = tpu.matmul %20, %8, %cst_17 {dimension_numbers = #tpu.dot_dimension_numbers<[1], [0], [0], [1], [0, 0, 1, 1], [], []>} : vector<8x32xf32>, vector<32x8xf32>, vector<8x8xf32> -> vector<8x8xf32>
    %22 = arith.addf %12, %21 : vector<8x8xf32>
    %23 = vector.broadcast %9 : vector<1x8xf32> to vector<8x8xf32>
    %24 = arith.addf %22, %23 : vector<8x8xf32>
    %25 = math.tanh %24 : vector<8x8xf32>
    %26 = vector.extract_strided_slice %5 {offsets = [8, 0], sizes = [8, 32], strides = [1, 1]} : vector<64x32xf32> to vector<8x32xf32>
    %27 = arith.addf %15, %26 : vector<8x32xf32>
    %28 = math.tanh %27 : vector<8x32xf32>
    %cst_18 = arith.constant dense<0.000000e+00> : vector<8x32xf32>
    %29 = tpu.matmul %28, %6, %cst_18 {dimension_numbers = #tpu.dot_dimension_numbers<[1], [0], [0], [1], [0, 0, 1, 1], [], []>} : vector<8x32xf32>, vector<32x32xf32>, vector<8x32xf32> -> vector<8x32xf32>
    %30 = arith.addf %20, %29 : vector<8x32xf32>
    %31 = vector.broadcast %7 : vector<1x32xf32> to vector<8x32xf32>
    %32 = arith.addf %30, %31 : vector<8x32xf32>
    %33 = math.tanh %32 : vector<8x32xf32>
    %cst_19 = arith.constant dense<0.000000e+00> : vector<8x8xf32>
    %34 = tpu.matmul %33, %8, %cst_19 {dimension_numbers = #tpu.dot_dimension_numbers<[1], [0], [0], [1], [0, 0, 1, 1], [], []>} : vector<8x32xf32>, vector<32x8xf32>, vector<8x8xf32> -> vector<8x8xf32>
    %35 = arith.addf %25, %34 : vector<8x8xf32>
    %36 = vector.broadcast %9 : vector<1x8xf32> to vector<8x8xf32>
    %37 = arith.addf %35, %36 : vector<8x8xf32>
    %38 = math.tanh %37 : vector<8x8xf32>
    %39 = vector.extract_strided_slice %5 {offsets = [16, 0], sizes = [8, 32], strides = [1, 1]} : vector<64x32xf32> to vector<8x32xf32>
    %40 = arith.addf %28, %39 : vector<8x32xf32>
    %41 = math.tanh %40 : vector<8x32xf32>
    %cst_20 = arith.constant dense<0.000000e+00> : vector<8x32xf32>
    %42 = tpu.matmul %41, %6, %cst_20 {dimension_numbers = #tpu.dot_dimension_numbers<[1], [0], [0], [1], [0, 0, 1, 1], [], []>} : vector<8x32xf32>, vector<32x32xf32>, vector<8x32xf32> -> vector<8x32xf32>
    %43 = arith.addf %33, %42 : vector<8x32xf32>
    %44 = vector.broadcast %7 : vector<1x32xf32> to vector<8x32xf32>
    %45 = arith.addf %43, %44 : vector<8x32xf32>
    %46 = math.tanh %45 : vector<8x32xf32>
    %cst_21 = arith.constant dense<0.000000e+00> : vector<8x8xf32>
    %47 = tpu.matmul %46, %8, %cst_21 {dimension_numbers = #tpu.dot_dimension_numbers<[1], [0], [0], [1], [0, 0, 1, 1], [], []>} : vector<8x32xf32>, vector<32x8xf32>, vector<8x8xf32> -> vector<8x8xf32>
    %48 = arith.addf %38, %47 : vector<8x8xf32>
    %49 = vector.broadcast %9 : vector<1x8xf32> to vector<8x8xf32>
    %50 = arith.addf %48, %49 : vector<8x8xf32>
    %51 = math.tanh %50 : vector<8x8xf32>
    %52 = vector.extract_strided_slice %5 {offsets = [24, 0], sizes = [8, 32], strides = [1, 1]} : vector<64x32xf32> to vector<8x32xf32>
    %53 = arith.addf %41, %52 : vector<8x32xf32>
    %54 = math.tanh %53 : vector<8x32xf32>
    %cst_22 = arith.constant dense<0.000000e+00> : vector<8x32xf32>
    %55 = tpu.matmul %54, %6, %cst_22 {dimension_numbers = #tpu.dot_dimension_numbers<[1], [0], [0], [1], [0, 0, 1, 1], [], []>} : vector<8x32xf32>, vector<32x32xf32>, vector<8x32xf32> -> vector<8x32xf32>
    %56 = arith.addf %46, %55 : vector<8x32xf32>
    %57 = vector.broadcast %7 : vector<1x32xf32> to vector<8x32xf32>
    %58 = arith.addf %56, %57 : vector<8x32xf32>
    %59 = math.tanh %58 : vector<8x32xf32>
    %cst_23 = arith.constant dense<0.000000e+00> : vector<8x8xf32>
    %60 = tpu.matmul %59, %8, %cst_23 {dimension_numbers = #tpu.dot_dimension_numbers<[1], [0], [0], [1], [0, 0, 1, 1], [], []>} : vector<8x32xf32>, vector<32x8xf32>, vector<8x8xf32> -> vector<8x8xf32>
    %61 = arith.addf %51, %60 : vector<8x8xf32>
    %62 = vector.broadcast %9 : vector<1x8xf32> to vector<8x8xf32>
    %63 = arith.addf %61, %62 : vector<8x8xf32>
    %64 = math.tanh %63 : vector<8x8xf32>
    %65 = vector.extract_strided_slice %5 {offsets = [32, 0], sizes = [8, 32], strides = [1, 1]} : vector<64x32xf32> to vector<8x32xf32>
    %66 = arith.addf %54, %65 : vector<8x32xf32>
    %67 = math.tanh %66 : vector<8x32xf32>
    %cst_24 = arith.constant dense<0.000000e+00> : vector<8x32xf32>
    %68 = tpu.matmul %67, %6, %cst_24 {dimension_numbers = #tpu.dot_dimension_numbers<[1], [0], [0], [1], [0, 0, 1, 1], [], []>} : vector<8x32xf32>, vector<32x32xf32>, vector<8x32xf32> -> vector<8x32xf32>
    %69 = arith.addf %59, %68 : vector<8x32xf32>
    %70 = vector.broadcast %7 : vector<1x32xf32> to vector<8x32xf32>
    %71 = arith.addf %69, %70 : vector<8x32xf32>
    %72 = math.tanh %71 : vector<8x32xf32>
    %cst_25 = arith.constant dense<0.000000e+00> : vector<8x8xf32>
    %73 = tpu.matmul %72, %8, %cst_25 {dimension_numbers = #tpu.dot_dimension_numbers<[1], [0], [0], [1], [0, 0, 1, 1], [], []>} : vector<8x32xf32>, vector<32x8xf32>, vector<8x8xf32> -> vector<8x8xf32>
    %74 = arith.addf %64, %73 : vector<8x8xf32>
    %75 = vector.broadcast %9 : vector<1x8xf32> to vector<8x8xf32>
    %76 = arith.addf %74, %75 : vector<8x8xf32>
    %77 = math.tanh %76 : vector<8x8xf32>
    %78 = vector.extract_strided_slice %5 {offsets = [40, 0], sizes = [8, 32], strides = [1, 1]} : vector<64x32xf32> to vector<8x32xf32>
    %79 = arith.addf %67, %78 : vector<8x32xf32>
    %80 = math.tanh %79 : vector<8x32xf32>
    %cst_26 = arith.constant dense<0.000000e+00> : vector<8x32xf32>
    %81 = tpu.matmul %80, %6, %cst_26 {dimension_numbers = #tpu.dot_dimension_numbers<[1], [0], [0], [1], [0, 0, 1, 1], [], []>} : vector<8x32xf32>, vector<32x32xf32>, vector<8x32xf32> -> vector<8x32xf32>
    %82 = arith.addf %72, %81 : vector<8x32xf32>
    %83 = vector.broadcast %7 : vector<1x32xf32> to vector<8x32xf32>
    %84 = arith.addf %82, %83 : vector<8x32xf32>
    %85 = math.tanh %84 : vector<8x32xf32>
    %cst_27 = arith.constant dense<0.000000e+00> : vector<8x8xf32>
    %86 = tpu.matmul %85, %8, %cst_27 {dimension_numbers = #tpu.dot_dimension_numbers<[1], [0], [0], [1], [0, 0, 1, 1], [], []>} : vector<8x32xf32>, vector<32x8xf32>, vector<8x8xf32> -> vector<8x8xf32>
    %87 = arith.addf %77, %86 : vector<8x8xf32>
    %88 = vector.broadcast %9 : vector<1x8xf32> to vector<8x8xf32>
    %89 = arith.addf %87, %88 : vector<8x8xf32>
    %90 = math.tanh %89 : vector<8x8xf32>
    %91 = vector.extract_strided_slice %5 {offsets = [48, 0], sizes = [8, 32], strides = [1, 1]} : vector<64x32xf32> to vector<8x32xf32>
    %92 = arith.addf %80, %91 : vector<8x32xf32>
    %93 = math.tanh %92 : vector<8x32xf32>
    %cst_28 = arith.constant dense<0.000000e+00> : vector<8x32xf32>
    %94 = tpu.matmul %93, %6, %cst_28 {dimension_numbers = #tpu.dot_dimension_numbers<[1], [0], [0], [1], [0, 0, 1, 1], [], []>} : vector<8x32xf32>, vector<32x32xf32>, vector<8x32xf32> -> vector<8x32xf32>
    %95 = arith.addf %85, %94 : vector<8x32xf32>
    %96 = vector.broadcast %7 : vector<1x32xf32> to vector<8x32xf32>
    %97 = arith.addf %95, %96 : vector<8x32xf32>
    %98 = math.tanh %97 : vector<8x32xf32>
    %cst_29 = arith.constant dense<0.000000e+00> : vector<8x8xf32>
    %99 = tpu.matmul %98, %8, %cst_29 {dimension_numbers = #tpu.dot_dimension_numbers<[1], [0], [0], [1], [0, 0, 1, 1], [], []>} : vector<8x32xf32>, vector<32x8xf32>, vector<8x8xf32> -> vector<8x8xf32>
    %100 = arith.addf %90, %99 : vector<8x8xf32>
    %101 = vector.broadcast %9 : vector<1x8xf32> to vector<8x8xf32>
    %102 = arith.addf %100, %101 : vector<8x8xf32>
    %103 = math.tanh %102 : vector<8x8xf32>
    %104 = vector.extract_strided_slice %5 {offsets = [56, 0], sizes = [8, 32], strides = [1, 1]} : vector<64x32xf32> to vector<8x32xf32>
    %105 = arith.addf %93, %104 : vector<8x32xf32>
    %106 = math.tanh %105 : vector<8x32xf32>
    %cst_30 = arith.constant dense<0.000000e+00> : vector<8x32xf32>
    %107 = tpu.matmul %106, %6, %cst_30 {dimension_numbers = #tpu.dot_dimension_numbers<[1], [0], [0], [1], [0, 0, 1, 1], [], []>} : vector<8x32xf32>, vector<32x32xf32>, vector<8x32xf32> -> vector<8x32xf32>
    %108 = arith.addf %98, %107 : vector<8x32xf32>
    %109 = vector.broadcast %7 : vector<1x32xf32> to vector<8x32xf32>
    %110 = arith.addf %108, %109 : vector<8x32xf32>
    %111 = math.tanh %110 : vector<8x32xf32>
    %cst_31 = arith.constant dense<0.000000e+00> : vector<8x8xf32>
    %112 = tpu.matmul %111, %8, %cst_31 {dimension_numbers = #tpu.dot_dimension_numbers<[1], [0], [0], [1], [0, 0, 1, 1], [], []>} : vector<8x32xf32>, vector<32x8xf32>, vector<8x8xf32> -> vector<8x8xf32>
    %113 = arith.addf %103, %112 : vector<8x8xf32>
    %114 = vector.broadcast %9 : vector<1x8xf32> to vector<8x8xf32>
    %115 = arith.addf %113, %114 : vector<8x8xf32>
    %116 = math.tanh %115 : vector<8x8xf32>
    %c0_32 = arith.constant 0 : index
    %c0_33 = arith.constant 0 : index
    %117 = vector.load %arg8[%c0_32, %c0_33] : memref<8x8xf32, #tpu.memory_space<vmem>>, vector<8x8xf32>
    tpu.vector_store %arg8[%c0_32, %c0_33], %116 {strides = array<i32>} : memref<8x8xf32, #tpu.memory_space<vmem>>, vector<8x8xf32>,
    return
  }
  func.func @transform_0(%arg0: i32) -> (i32, i32) {
    %c0_i32 = arith.constant 0 : i32
    %c0_i32_0 = arith.constant 0 : i32
    %c0_i32_1 = arith.constant 0 : i32
    return %c0_i32, %c0_i32_0 : i32, i32
  }
  func.func @transform_1(%arg0: i32) -> (i32, i32) {
    %c0_i32 = arith.constant 0 : i32
    %c0_i32_0 = arith.constant 0 : i32
    %c0_i32_1 = arith.constant 0 : i32
    return %c0_i32, %c0_i32_0 : i32, i32
  }
  func.func @transform_2(%arg0: i32) -> (i32, i32) {
    %c0_i32 = arith.constant 0 : i32
    %c0_i32_0 = arith.constant 0 : i32
    %c0_i32_1 = arith.constant 0 : i32
    return %c0_i32, %c0_i32_0 : i32, i32
  }
  func.func @transform_3(%arg0: i32) -> (i32, i32) {
    %c0_i32 = arith.constant 0 : i32
    %c0_i32_0 = arith.constant 0 : i32
    %c0_i32_1 = arith.constant 0 : i32
    return %c0_i32, %c0_i32_0 : i32, i32
  }
  func.func @transform_4(%arg0: i32) -> (i32, i32) {
    %c0_i32 = arith.constant 0 : i32
    %c0_i32_0 = arith.constant 0 : i32
    %c0_i32_1 = arith.constant 0 : i32
    return %c0_i32, %c0_i32_0 : i32, i32
  }
  func.func @transform_5(%arg0: i32) -> (i32, i32) {
    %c0_i32 = arith.constant 0 : i32
    %c0_i32_0 = arith.constant 0 : i32
    %c0_i32_1 = arith.constant 0 : i32
    return %c0_i32, %c0_i32_0 : i32, i32
  }
  func.func @transform_6(%arg0: i32) -> (i32, i32) {
    %c0_i32 = arith.constant 0 : i32
    %c0_i32_0 = arith.constant 0 : i32
    %c0_i32_1 = arith.constant 0 : i32
    return %c0_i32, %c0_i32_0 : i32, i32
  }
  func.func @transform_7(%arg0: i32) -> (i32, i32) {
    %c0_i32 = arith.constant 0 : i32
    %c0_i32_0 = arith.constant 0 : i32
    %c0_i32_1 = arith.constant 0 : i32
    return %c0_i32, %c0_i32_0 : i32, i32
  }
}

</mosaic_0001>

<llo_original>
// kernel: tpu_custom_call.1
$region0: #{tpu_custom_call.1}
  #allocation0 [shape = 'u32[]', space=smem, size = 0x4, offset = 0x4, fixed_abs, tag = 'smem constant byte address 0x4 - core index']
  #allocation1 [shape = 'u32[144,128]{1,0:T(1,128)}', space=vmem, size = 0x12000, scoped, tag = 'internal scratch']
  %s0 = inlined_call_operand.vmem [shape: f32[64,16], index: 0, kind: input, shape index: {}]
  %s1 = inlined_call_operand.vmem [shape: f32[16,32], index: 1, kind: input, shape index: {}]
  %s2 = inlined_call_operand.vmem [shape: f32[1,32], index: 2, kind: input, shape index: {}]
  %s3 = inlined_call_operand.vmem [shape: f32[32,32], index: 3, kind: input, shape index: {}]
  %s4 = inlined_call_operand.vmem [shape: f32[1,32], index: 4, kind: input, shape index: {}]
  %s5 = inlined_call_operand.vmem [shape: f32[32,8], index: 5, kind: input, shape index: {}]
  %s6 = inlined_call_operand.vmem [shape: f32[1,8], index: 6, kind: input, shape index: {}]
  %s7 = inlined_call_operand.hbm [shape: f32[8,8], index: 7, kind: output, shape index: {}]
  %s8 = sld [smem:[#allocation0]]
  $region38: #{tpu_custom_call.1} parent=0
    _
  %s10 = ssub.s32 1, %s8
  %s11 = scalar_select 0, %s10, %s8
  $region1: #{tpu_custom_call.1} parent=0
    #allocation2 [shape = 'u8[4096]{0}', space=vmem, size = 0x1000, scoped, tag = 'output window, operand 0, single buffered']
    #allocation3 [shape = 's32[1]{0}', space=sflag, size = 0x4, scoped, tag = 'scoped memory for tpu_custom_call.1']
    %12 = vsyncpa [#allocation3], 0
    // Predicated region
    $region2: #{tpu_custom_call.1} parent=1 // pred_check
      _
    $region3: #{tpu_custom_call.1} parent=1 // pred_check_branch
      %14 = sbr.rel (0) target = $region5
    $region4: #{tpu_custom_call.1} parent=1 // pred_region
      _
    $region5: #{tpu_custom_call.1} parent=1 // pred_fallthru
      _
    // Predicated region
    $region6: #{tpu_custom_call.1} parent=1 // pred_check
      _
    $region7: #{tpu_custom_call.1} parent=1 // pred_check_branch
      %16 = sbr.rel (0) target = $region9
    $region8: #{tpu_custom_call.1} parent=1 // pred_region
      _
    $region9: #{tpu_custom_call.1} parent=1 // pred_fallthru
      _
    // Predicated region
    $region10: #{tpu_custom_call.1} parent=1 // pred_check
      _
    $region11: #{tpu_custom_call.1} parent=1 // pred_check_branch
      %18 = sbr.rel (0) target = $region13
    $region12: #{tpu_custom_call.1} parent=1 // pred_region
      _
    $region13: #{tpu_custom_call.1} parent=1 // pred_fallthru
      _
    // Predicated region
    $region14: #{tpu_custom_call.1} parent=1 // pred_check
      _
    $region15: #{tpu_custom_call.1} parent=1 // pred_check_branch
      %20 = sbr.rel (0) target = $region17
    $region16: #{tpu_custom_call.1} parent=1 // pred_region
      _
    $region17: #{tpu_custom_call.1} parent=1 // pred_fallthru
      _
    // Predicated region
    $region18: #{tpu_custom_call.1} parent=1 // pred_check
      _
    $region19: #{tpu_custom_call.1} parent=1 // pred_check_branch
      %22 = sbr.rel (0) target = $region21
    $region20: #{tpu_custom_call.1} parent=1 // pred_region
      _
    $region21: #{tpu_custom_call.1} parent=1 // pred_fallthru
      _
    // Predicated region
    $region22: #{tpu_custom_call.1} parent=1 // pred_check
      _
    $region23: #{tpu_custom_call.1} parent=1 // pred_check_branch
      %24 = sbr.rel (0) target = $region25
    $region24: #{tpu_custom_call.1} parent=1 // pred_region
      _
    $region25: #{tpu_custom_call.1} parent=1 // pred_fallthru
      _
    // Predicated region
    $region26: #{tpu_custom_call.1} parent=1 // pred_check
      _
    $region27: #{tpu_custom_call.1} parent=1 // pred_check_branch
      %26 = sbr.rel (0) target = $region29
    $region28: #{tpu_custom_call.1} parent=1 // pred_region
      _
    $region29: #{tpu_custom_call.1} parent=1 // pred_fallthru
      _
    %v27 = vld [vmem:[%s0] sm:$0xff]
    %v28 = vld [vmem:[%s0 + $0x8] sm:$0xff]
    %v29 = vld [vmem:[%s0 + $0x10] sm:$0xff]
    %v30 = vld [vmem:[%s0 + $0x18] sm:$0xff]
    %v31 = vld [vmem:[%s0 + $0x20] sm:$0xff]
    %v32 = vld [vmem:[%s0 + $0x28] sm:$0xff]
    %v33 = vld [vmem:[%s0 + $0x30] sm:$0xff]
    %v34 = vld [vmem:[%s0 + $0x38] sm:$0xff]
    %v35 = vld [vmem:[%s1] sm:$0xff]
    %v36 = vld [vmem:[%s1 + $0x8] sm:$0xff]
    %v37 = vld [vmem:[%s2] sm:$0x1]
    %v39 = vlaneseq
    %v40 = vshrl.u32 %v39, 7
    %v41 = vsub.s32 0, %v40
    %v42 = vrot.slane %v37, %v41
    %vm44 = vcmask 130048
    %v46 = vsel %vm44, %v27, 0
    %v49 = vsel %vm44, %v28, 0
    %v52 = vsel %vm44, %v29, 0
    %v55 = vsel %vm44, %v30, 0
    %v58 = vsel %vm44, %v31, 0
    %v61 = vsel %vm44, %v32, 0
    %v64 = vsel %vm44, %v33, 0
    %v67 = vsel %vm44, %v34, 0
    %69 = vmatprep.subr.mxu0 0.0
    %70 = vmatpush1.msra.mxu0 %v35
    %71 = vmatprep.subr.mxu0 0.0
    %72 = vmatpush1.msra.mxu0 %v36
    %73 = vmatprep.subr.mxu0 0.0
    %74 = vmatpush1.msra.mxu0 0.0
    %75 = vmatprep.subr.mxu0 0.0
    %76 = vmatpush1.msra.mxu0 0.0
    %77 = vmatprep.subr.mxu0 0.0
    %78 = vmatpush1.msra.mxu0 0.0
    %79 = vmatprep.subr.mxu0 0.0
    %80 = vmatpush1.msra.mxu0 0.0
    %81 = vmatprep.subr.mxu0 0.0
    %82 = vmatpush1.msra.mxu0 0.0
    %83 = vmatprep.subr.mxu0 0.0
    %84 = vmatpush1.msra.mxu0 0.0
    %85 = vmatprep.subr.mxu0 0.0
    %86 = vmatpush1.msra.mxu0 0.0
    %87 = vmatprep.subr.mxu0 0.0
    %88 = vmatpush1.msra.mxu0 0.0
    %89 = vmatprep.subr.mxu0 0.0
    %90 = vmatpush1.msra.mxu0 0.0
    %91 = vmatprep.subr.mxu0 0.0
    %92 = vmatpush1.msra.mxu0 0.0
    %93 = vmatprep.subr.mxu0 0.0
    %94 = vmatpush1.msra.mxu0 0.0
    %95 = vmatprep.subr.mxu0 0.0
    %96 = vmatpush1.msra.mxu0 0.0
    %97 = vmatprep.subr.mxu0 0.0
    %98 = vmatpush1.msra.mxu0 0.0
    %99 = vmatprep.subr.mxu0 0.0
    %100 = vmatpush1.msra.mxu0 0.0
    %101 = vmatprep.subr.mxu0 0.0
    %102 = vmatpush1.msra.mxu0 0.0
    %103 = vmatprep.subr.mxu0 0.0
    %104 = vmatpush1.msra.mxu0 0.0
    %105 = vmatprep.subr.mxu0 0.0
    %106 = vmatpush1.msra.mxu0 0.0
    %107 = vmatprep.subr.mxu0 0.0
    %108 = vmatpush1.msra.mxu0 0.0
    %109 = vmatprep.subr.mxu0 0.0
    %110 = vmatpush1.msra.mxu0 0.0
    %111 = vmatprep.subr.mxu0 0.0
    %112 = vmatpush1.msra.mxu0 0.0
    %113 = vmatprep.subr.mxu0 0.0
    %114 = vmatpush1.msra.mxu0 0.0
    %115 = vmatprep.subr.mxu0 0.0
    %116 = vmatpush1.msra.mxu0 0.0
    %117 = vmatprep.subr.mxu0 0.0
    %118 = vmatpush1.msra.mxu0 0.0
    %119 = vmatprep.subr.mxu0 0.0
    %120 = vmatpush1.msra.mxu0 0.0
    %121 = vmatprep.subr.mxu0 0.0
    %122 = vmatpush1.msra.mxu0 0.0
    %123 = vmatprep.subr.mxu0 0.0
    %124 = vmatpush1.msra.mxu0 0.0
    %125 = vmatprep.subr.mxu0 0.0
    %126 = vmatpush1.msra.mxu0 0.0
    %127 = vmatprep.subr.mxu0 0.0
    %128 = vmatpush1.msra.mxu0 0.0
    %129 = vmatprep.subr.mxu0 0.0
    %130 = vmatpush1.msra.mxu0 0.0
    %131 = vmatprep.subr.mxu0 0.0
    %132 = vmatpush1.msra.mxu0 0.0
    %133 = vmatprep.mubr.f32.mxu0 0.0
    %134 = vmatmul.mubr.f32.gmra.mrb[0].mxu0 %v46
    %v135 = vpop.f32.mrb[0].mxu0
    %v136 = vadd.f32 %v42, %v135
    %v137 = vpop.f32.mrb[0].mxu0
    %138 = vmatprep.mubr.f32.mxu0 0.0
    %139 = vmatmul.mubr.f32.gmra.mrb[0].mxu0 %v49
    %v140 = vpop.f32.mrb[0].mxu0
    %v141 = vadd.f32 %v42, %v140
    %v142 = vpop.f32.mrb[0].mxu0
    %143 = vmatprep.mubr.f32.mxu0 0.0
    %144 = vmatmul.mubr.f32.gmra.mrb[0].mxu0 %v52
    %v145 = vpop.f32.mrb[0].mxu0
    %v146 = vadd.f32 %v42, %v145
    %v147 = vpop.f32.mrb[0].mxu0
    %148 = vmatprep.mubr.f32.mxu0 0.0
    %149 = vmatmul.mubr.f32.gmra.mrb[0].mxu0 %v55
    %v150 = vpop.f32.mrb[0].mxu0
    %v151 = vadd.f32 %v42, %v150
    %v152 = vpop.f32.mrb[0].mxu0
    %153 = vmatprep.mubr.f32.mxu0 0.0
    %154 = vmatmul.mubr.f32.gmra.mrb[0].mxu0 %v58
    %v155 = vpop.f32.mrb[0].mxu0
    %v156 = vadd.f32 %v42, %v155
    %v157 = vpop.f32.mrb[0].mxu0
    %158 = vmatprep.mubr.f32.mxu0 0.0
    %159 = vmatmul.mubr.f32.gmra.mrb[0].mxu0 %v61
    %v160 = vpop.f32.mrb[0].mxu0
    %v161 = vadd.f32 %v42, %v160
    %v162 = vpop.f32.mrb[0].mxu0
    %163 = vmatprep.mubr.f32.mxu0 0.0
    %164 = vmatmul.mubr.f32.gmra.mrb[0].mxu0 %v64
    %v165 = vpop.f32.mrb[0].mxu0
    %v166 = vadd.f32 %v42, %v165
    %v167 = vpop.f32.mrb[0].mxu0
    %168 = vmatprep.mubr.f32.mxu0 0.0
    %169 = vmatmul.mubr.f32.gmra.mrb[0].mxu0 %v67
    %v170 = vpop.f32.mrb[0].mxu0
    %v171 = vadd.f32 %v42, %v170
    %v172 = vpop.f32.mrb[0].mxu0
    %173 = vdwg.mxu0
    %v174 = vld [vmem:[%s3] sm:$0xff]
    %v175 = vld [vmem:[%s3 + $0x8] sm:$0xff]
    %v176 = vld [vmem:[%s3 + $0x10] sm:$0xff]
    %v177 = vld [vmem:[%s3 + $0x18] sm:$0xff]
    %v178 = vld [vmem:[%s4] sm:$0x1]
    %v179 = vld [vmem:[%s5] sm:$0xff]
    %v180 = vld [vmem:[%s5 + $0x8] sm:$0xff]
    %v181 = vld [vmem:[%s5 + $0x10] sm:$0xff]
    %v182 = vld [vmem:[%s5 + $0x18] sm:$0xff]
    %v183 = vld [vmem:[%s6] sm:$0x1]
    %v184 = vadd.f32 %v136, 0.0
    %v185 = vtanh.pop %v184
    %v187 = vlaneseq
    %v188 = vshrl.u32 %v187, 7
    %v189 = vsub.s32 0, %v188
    %v190 = vrot.slane %v178, %v189
    %vm192 = vcmask 261120
    %v194 = vsel %vm192, %v185, 0
    %196 = vmatprep.subr.mxu0 0.0
    %197 = vmatpush1.msra.mxu0 %v174
    %198 = vmatprep.subr.mxu0 0.0
    %199 = vmatpush1.msra.mxu0 %v175
    %200 = vmatprep.subr.mxu0 0.0
    %201 = vmatpush1.msra.mxu0 %v176
    %202 = vmatprep.subr.mxu0 0.0
    %203 = vmatpush1.msra.mxu0 %v177
    %204 = vmatprep.subr.mxu0 0.0
    %205 = vmatpush1.msra.mxu0 0.0
    %206 = vmatprep.subr.mxu0 0.0
    %207 = vmatpush1.msra.mxu0 0.0
    %208 = vmatprep.subr.mxu0 0.0
    %209 = vmatpush1.msra.mxu0 0.0
    %210 = vmatprep.subr.mxu0 0.0
    %211 = vmatpush1.msra.mxu0 0.0
    %212 = vmatprep.subr.mxu0 0.0
    %213 = vmatpush1.msra.mxu0 0.0
    %214 = vmatprep.subr.mxu0 0.0
    %215 = vmatpush1.msra.mxu0 0.0
    %216 = vmatprep.subr.mxu0 0.0
    %217 = vmatpush1.msra.mxu0 0.0
    %218 = vmatprep.subr.mxu0 0.0
    %219 = vmatpush1.msra.mxu0 0.0
    %220 = vmatprep.subr.mxu0 0.0
    %221 = vmatpush1.msra.mxu0 0.0
    %222 = vmatprep.subr.mxu0 0.0
    %223 = vmatpush1.msra.mxu0 0.0
    %224 = vmatprep.subr.mxu0 0.0
    %225 = vmatpush1.msra.mxu0 0.0
    %226 = vmatprep.subr.mxu0 0.0
    %227 = vmatpush1.msra.mxu0 0.0
    %228 = vmatprep.subr.mxu0 0.0
    %229 = vmatpush1.msra.mxu0 0.0
    %230 = vmatprep.subr.mxu0 0.0
    %231 = vmatpush1.msra.mxu0 0.0
    %232 = vmatprep.subr.mxu0 0.0
    %233 = vmatpush1.msra.mxu0 0.0
    %234 = vmatprep.subr.mxu0 0.0
    %235 = vmatpush1.msra.mxu0 0.0
    %236 = vmatprep.subr.mxu0 0.0
    %237 = vmatpush1.msra.mxu0 0.0
    %238 = vmatprep.subr.mxu0 0.0
    %239 = vmatpush1.msra.mxu0 0.0
    %240 = vmatprep.subr.mxu0 0.0
    %241 = vmatpush1.msra.mxu0 0.0
    %242 = vmatprep.subr.mxu0 0.0
    %243 = vmatpush1.msra.mxu0 0.0
    %244 = vmatprep.subr.mxu0 0.0
    %245 = vmatpush1.msra.mxu0 0.0
    %246 = vmatprep.subr.mxu0 0.0
    %247 = vmatpush1.msra.mxu0 0.0
    %248 = vmatprep.subr.mxu0 0.0
    %249 = vmatpush1.msra.mxu0 0.0
    %250 = vmatprep.subr.mxu0 0.0
    %251 = vmatpush1.msra.mxu0 0.0
    %252 = vmatprep.subr.mxu0 0.0
    %253 = vmatpush1.msra.mxu0 0.0
    %254 = vmatprep.subr.mxu0 0.0
    %255 = vmatpush1.msra.mxu0 0.0
    %256 = vmatprep.subr.mxu0 0.0
    %257 = vmatpush1.msra.mxu0 0.0
    %258 = vmatprep.subr.mxu0 0.0
    %259 = vmatpush1.msra.mxu0 0.0
    %260 = vmatprep.mubr.f32.mxu0 0.0
    %261 = vmatmul.mubr.f32.gmra.mrb[0].mxu0 %v194
    %v262 = vpop.f32.mrb[0].mxu0
    %v263 = vadd.f32 %v190, %v262
    %v264 = vpop.f32.mrb[0].mxu0
    %265 = vdwg.mxu0
    %v266 = vtanh.pop %v263
    %v268 = vlaneseq
    %v269 = vshrl.u32 %v268, 7
    %v270 = vsub.s32 0, %v269
    %v271 = vrot.slane %v183, %v270
    %v274 = vsel %vm192, %v266, 0
    %276 = vmatprep.subr.mxu0 0.0
    %277 = vmatpush1.msra.mxu0 %v179
    %278 = vmatprep.subr.mxu0 0.0
    %279 = vmatpush1.msra.mxu0 %v180
    %280 = vmatprep.subr.mxu0 0.0
    %281 = vmatpush1.msra.mxu0 %v181
    %282 = vmatprep.subr.mxu0 0.0
    %283 = vmatpush1.msra.mxu0 %v182
    %284 = vmatprep.subr.mxu0 0.0
    %285 = vmatpush1.msra.mxu0 0.0
    %286 = vmatprep.subr.mxu0 0.0
    %287 = vmatpush1.msra.mxu0 0.0
    %288 = vmatprep.subr.mxu0 0.0
    %289 = vmatpush1.msra.mxu0 0.0
    %290 = vmatprep.subr.mxu0 0.0
    %291 = vmatpush1.msra.mxu0 0.0
    %292 = vmatprep.subr.mxu0 0.0
    %293 = vmatpush1.msra.mxu0 0.0
    %294 = vmatprep.subr.mxu0 0.0
    %295 = vmatpush1.msra.mxu0 0.0
    %296 = vmatprep.subr.mxu0 0.0
    %297 = vmatpush1.msra.mxu0 0.0
    %298 = vmatprep.subr.mxu0 0.0
    %299 = vmatpush1.msra.mxu0 0.0
    %300 = vmatprep.subr.mxu0 0.0
    %301 = vmatpush1.msra.mxu0 0.0
    %302 = vmatprep.subr.mxu0 0.0
    %303 = vmatpush1.msra.mxu0 0.0
    %304 = vmatprep.subr.mxu0 0.0
    %305 = vmatpush1.msra.mxu0 0.0
    %306 = vmatprep.subr.mxu0 0.0
    %307 = vmatpush1.msra.mxu0 0.0
    %308 = vmatprep.subr.mxu0 0.0
    %309 = vmatpush1.msra.mxu0 0.0
    %310 = vmatprep.subr.mxu0 0.0
    %311 = vmatpush1.msra.mxu0 0.0
    %312 = vmatprep.subr.mxu0 0.0
    %313 = vmatpush1.msra.mxu0 0.0
    %314 = vmatprep.subr.mxu0 0.0
    %315 = vmatpush1.msra.mxu0 0.0
    %316 = vmatprep.subr.mxu0 0.0
    %317 = vmatpush1.msra.mxu0 0.0
    %318 = vmatprep.subr.mxu0 0.0
    %319 = vmatpush1.msra.mxu0 0.0
    %320 = vmatprep.subr.mxu0 0.0
    %321 = vmatpush1.msra.mxu0 0.0
    %322 = vmatprep.subr.mxu0 0.0
    %323 = vmatpush1.msra.mxu0 0.0
    %324 = vmatprep.subr.mxu0 0.0
    %325 = vmatpush1.msra.mxu0 0.0
    %326 = vmatprep.subr.mxu0 0.0
    %327 = vmatpush1.msra.mxu0 0.0
    %328 = vmatprep.subr.mxu0 0.0
    %329 = vmatpush1.msra.mxu0 0.0
    %330 = vmatprep.subr.mxu0 0.0
    %331 = vmatpush1.msra.mxu0 0.0
    %332 = vmatprep.subr.mxu0 0.0
    %333 = vmatpush1.msra.mxu0 0.0
    %334 = vmatprep.subr.mxu0 0.0
    %335 = vmatpush1.msra.mxu0 0.0
    %336 = vmatprep.subr.mxu0 0.0
    %337 = vmatpush1.msra.mxu0 0.0
    %338 = vmatprep.subr.mxu0 0.0
    %339 = vmatpush1.msra.mxu0 0.0
    %340 = vmatprep.mubr.f32.mxu0 0.0
    %341 = vmatmul.mubr.f32.gmra.mrb[0].mxu0 %v274
    %v342 = vpop.f32.mrb[0].mxu0
    %v343 = vadd.f32 %v271, %v342
    %v344 = vpop.f32.mrb[0].mxu0
    %345 = vdwg.mxu0
    %v346 = vtanh.pop %v343
    %v347 = vadd.f32 %v185, %v141
    %v348 = vtanh.pop %v347
    %v350 = vsel %vm192, %v348, 0
    %352 = vmatprep.subr.mxu0 0.0
    %353 = vmatpush1.msra.mxu0 %v174
    %354 = vmatprep.subr.mxu0 0.0
    %355 = vmatpush1.msra.mxu0 %v175
    %356 = vmatprep.subr.mxu0 0.0
    %357 = vmatpush1.msra.mxu0 %v176
    %358 = vmatprep.subr.mxu0 0.0
    %359 = vmatpush1.msra.mxu0 %v177
    %360 = vmatprep.subr.mxu0 0.0
    %361 = vmatpush1.msra.mxu0 0.0
    %362 = vmatprep.subr.mxu0 0.0
    %363 = vmatpush1.msra.mxu0 0.0
    %364 = vmatprep.subr.mxu0 0.0
    %365 = vmatpush1.msra.mxu0 0.0
    %366 = vmatprep.subr.mxu0 0.0
    %367 = vmatpush1.msra.mxu0 0.0
    %368 = vmatprep.subr.mxu0 0.0
    %369 = vmatpush1.msra.mxu0 0.0
    %370 = vmatprep.subr.mxu0 0.0
    %371 = vmatpush1.msra.mxu0 0.0
    %372 = vmatprep.subr.mxu0 0.0
    %373 = vmatpush1.msra.mxu0 0.0
    %374 = vmatprep.subr.mxu0 0.0
    %375 = vmatpush1.msra.mxu0 0.0
    %376 = vmatprep.subr.mxu0 0.0
    %377 = vmatpush1.msra.mxu0 0.0
    %378 = vmatprep.subr.mxu0 0.0
    %379 = vmatpush1.msra.mxu0 0.0
    %380 = vmatprep.subr.mxu0 0.0
    %381 = vmatpush1.msra.mxu0 0.0
    %382 = vmatprep.subr.mxu0 0.0
    %383 = vmatpush1.msra.mxu0 0.0
    %384 = vmatprep.subr.mxu0 0.0
    %385 = vmatpush1.msra.mxu0 0.0
    %386 = vmatprep.subr.mxu0 0.0
    %387 = vmatpush1.msra.mxu0 0.0
    %388 = vmatprep.subr.mxu0 0.0
    %389 = vmatpush1.msra.mxu0 0.0
    %390 = vmatprep.subr.mxu0 0.0
    %391 = vmatpush1.msra.mxu0 0.0
    %392 = vmatprep.subr.mxu0 0.0
    %393 = vmatpush1.msra.mxu0 0.0
    %394 = vmatprep.subr.mxu0 0.0
    %395 = vmatpush1.msra.mxu0 0.0
    %396 = vmatprep.subr.mxu0 0.0
    %397 = vmatpush1.msra.mxu0 0.0
    %398 = vmatprep.subr.mxu0 0.0
    %399 = vmatpush1.msra.mxu0 0.0
    %400 = vmatprep.subr.mxu0 0.0
    %401 = vmatpush1.msra.mxu0 0.0
    %402 = vmatprep.subr.mxu0 0.0
    %403 = vmatpush1.msra.mxu0 0.0
    %404 = vmatprep.subr.mxu0 0.0
    %405 = vmatpush1.msra.mxu0 0.0
    %406 = vmatprep.subr.mxu0 0.0
    %407 = vmatpush1.msra.mxu0 0.0
    %408 = vmatprep.subr.mxu0 0.0
    %409 = vmatpush1.msra.mxu0 0.0
    %410 = vmatprep.subr.mxu0 0.0
    %411 = vmatpush1.msra.mxu0 0.0
    %412 = vmatprep.subr.mxu0 0.0
    %413 = vmatpush1.msra.mxu0 0.0
    %414 = vmatprep.subr.mxu0 0.0
    %415 = vmatpush1.msra.mxu0 0.0
    %416 = vmatprep.mubr.f32.mxu0 0.0
    %417 = vmatmul.mubr.f32.gmra.mrb[0].mxu0 %v350
    %v418 = vpop.f32.mrb[0].mxu0
    %v419 = vadd.f32 0.0, %v418
    %v420 = vpop.f32.mrb[0].mxu0
    %421 = vdwg.mxu0
    %v422 = vadd.f32 %v266, %v419
    %v423 = vadd.f32 %v422, %v190
    %v424 = vtanh.pop %v423
    %v426 = vsel %vm192, %v424, 0
    %428 = vmatprep.subr.mxu0 0.0
    %429 = vmatpush1.msra.mxu0 %v179
    %430 = vmatprep.subr.mxu0 0.0
    %431 = vmatpush1.msra.mxu0 %v180
    %432 = vmatprep.subr.mxu0 0.0
    %433 = vmatpush1.msra.mxu0 %v181
    %434 = vmatprep.subr.mxu0 0.0
    %435 = vmatpush1.msra.mxu0 %v182
    %436 = vmatprep.subr.mxu0 0.0
    %437 = vmatpush1.msra.mxu0 0.0
    %438 = vmatprep.subr.mxu0 0.0
    %439 = vmatpush1.msra.mxu0 0.0
    %440 = vmatprep.subr.mxu0 0.0
    %441 = vmatpush1.msra.mxu0 0.0
    %442 = vmatprep.subr.mxu0 0.0
    %443 = vmatpush1.msra.mxu0 0.0
    %444 = vmatprep.subr.mxu0 0.0
    %445 = vmatpush1.msra.mxu0 0.0
    %446 = vmatprep.subr.mxu0 0.0
    %447 = vmatpush1.msra.mxu0 0.0
    %448 = vmatprep.subr.mxu0 0.0
    %449 = vmatpush1.msra.mxu0 0.0
    %450 = vmatprep.subr.mxu0 0.0
    %451 = vmatpush1.msra.mxu0 0.0
    %452 = vmatprep.subr.mxu0 0.0
    %453 = vmatpush1.msra.mxu0 0.0
    %454 = vmatprep.subr.mxu0 0.0
    %455 = vmatpush1.msra.mxu0 0.0
    %456 = vmatprep.subr.mxu0 0.0
    %457 = vmatpush1.msra.mxu0 0.0
    %458 = vmatprep.subr.mxu0 0.0
    %459 = vmatpush1.msra.mxu0 0.0
    %460 = vmatprep.subr.mxu0 0.0
    %461 = vmatpush1.msra.mxu0 0.0
    %462 = vmatprep.subr.mxu0 0.0
    %463 = vmatpush1.msra.mxu0 0.0
    %464 = vmatprep.subr.mxu0 0.0
    %465 = vmatpush1.msra.mxu0 0.0
    %466 = vmatprep.subr.mxu0 0.0
    %467 = vmatpush1.msra.mxu0 0.0
    %468 = vmatprep.subr.mxu0 0.0
    %469 = vmatpush1.msra.mxu0 0.0
    %470 = vmatprep.subr.mxu0 0.0
    %471 = vmatpush1.msra.mxu0 0.0
    %472 = vmatprep.subr.mxu0 0.0
    %473 = vmatpush1.msra.mxu0 0.0
    %474 = vmatprep.subr.mxu0 0.0
    %475 = vmatpush1.msra.mxu0 0.0
    %476 = vmatprep.subr.mxu0 0.0
    %477 = vmatpush1.msra.mxu0 0.0
    %478 = vmatprep.subr.mxu0 0.0
    %479 = vmatpush1.msra.mxu0 0.0
    %480 = vmatprep.subr.mxu0 0.0
    %481 = vmatpush1.msra.mxu0 0.0
    %482 = vmatprep.subr.mxu0 0.0
    %483 = vmatpush1.msra.mxu0 0.0
    %484 = vmatprep.subr.mxu0 0.0
    %485 = vmatpush1.msra.mxu0 0.0
    %486 = vmatprep.subr.mxu0 0.0
    %487 = vmatpush1.msra.mxu0 0.0
    %488 = vmatprep.subr.mxu0 0.0
    %489 = vmatpush1.msra.mxu0 0.0
    %490 = vmatprep.subr.mxu0 0.0
    %491 = vmatpush1.msra.mxu0 0.0
    %492 = vmatprep.mubr.f32.mxu0 0.0
    %493 = vmatmul.mubr.f32.gmra.mrb[0].mxu0 %v426
    %v494 = vpop.f32.mrb[0].mxu0
    %v495 = vadd.f32 0.0, %v494
    %v496 = vpop.f32.mrb[0].mxu0
    %497 = vdwg.mxu0
    %v498 = vadd.f32 %v346, %v495
    %v499 = vadd.f32 %v498, %v271
    %v500 = vtanh.pop %v499
    %v501 = vadd.f32 %v348, %v146
    %v502 = vtanh.pop %v501
    %v504 = vsel %vm192, %v502, 0
    %506 = vmatprep.subr.mxu0 0.0
    %507 = vmatpush1.msra.mxu0 %v174
    %508 = vmatprep.subr.mxu0 0.0
    %509 = vmatpush1.msra.mxu0 %v175
    %510 = vmatprep.subr.mxu0 0.0
    %511 = vmatpush1.msra.mxu0 %v176
    %512 = vmatprep.subr.mxu0 0.0
    %513 = vmatpush1.msra.mxu0 %v177
    %514 = vmatprep.subr.mxu0 0.0
    %515 = vmatpush1.msra.mxu0 0.0
    %516 = vmatprep.subr.mxu0 0.0
    %517 = vmatpush1.msra.mxu0 0.0
    %518 = vmatprep.subr.mxu0 0.0
    %519 = vmatpush1.msra.mxu0 0.0
    %520 = vmatprep.subr.mxu0 0.0
    %521 = vmatpush1.msra.mxu0 0.0
    %522 = vmatprep.subr.mxu0 0.0
    %523 = vmatpush1.msra.mxu0 0.0
    %524 = vmatprep.subr.mxu0 0.0
    %525 = vmatpush1.msra.mxu0 0.0
    %526 = vmatprep.subr.mxu0 0.0
    %527 = vmatpush1.msra.mxu0 0.0
    %528 = vmatprep.subr.mxu0 0.0
    %529 = vmatpush1.msra.mxu0 0.0
    %530 = vmatprep.subr.mxu0 0.0
    %531 = vmatpush1.msra.mxu0 0.0
    %532 = vmatprep.subr.mxu0 0.0
    %533 = vmatpush1.msra.mxu0 0.0
    %534 = vmatprep.subr.mxu0 0.0
    %535 = vmatpush1.msra.mxu0 0.0
    %536 = vmatprep.subr.mxu0 0.0
    %537 = vmatpush1.msra.mxu0 0.0
    %538 = vmatprep.subr.mxu0 0.0
    %539 = vmatpush1.msra.mxu0 0.0
    %540 = vmatprep.subr.mxu0 0.0
    %541 = vmatpush1.msra.mxu0 0.0
    %542 = vmatprep.subr.mxu0 0.0
    %543 = vmatpush1.msra.mxu0 0.0
    %544 = vmatprep.subr.mxu0 0.0
    %545 = vmatpush1.msra.mxu0 0.0
    %546 = vmatprep.subr.mxu0 0.0
    %547 = vmatpush1.msra.mxu0 0.0
    %548 = vmatprep.subr.mxu0 0.0
    %549 = vmatpush1.msra.mxu0 0.0
    %550 = vmatprep.subr.mxu0 0.0
    %551 = vmatpush1.msra.mxu0 0.0
    %552 = vmatprep.subr.mxu0 0.0
    %553 = vmatpush1.msra.mxu0 0.0
    %554 = vmatprep.subr.mxu0 0.0
    %555 = vmatpush1.msra.mxu0 0.0
    %556 = vmatprep.subr.mxu0 0.0
    %557 = vmatpush1.msra.mxu0 0.0
    %558 = vmatprep.subr.mxu0 0.0
    %559 = vmatpush1.msra.mxu0 0.0
    %560 = vmatprep.subr.mxu0 0.0
    %561 = vmatpush1.msra.mxu0 0.0
    %562 = vmatprep.subr.mxu0 0.0
    %563 = vmatpush1.msra.mxu0 0.0
    %564 = vmatprep.subr.mxu0 0.0
    %565 = vmatpush1.msra.mxu0 0.0
    %566 = vmatprep.subr.mxu0 0.0
    %567 = vmatpush1.msra.mxu0 0.0
    %568 = vmatprep.subr.mxu0 0.0
    %569 = vmatpush1.msra.mxu0 0.0
    %570 = vmatprep.mubr.f32.mxu0 0.0
    %571 = vmatmul.mubr.f32.gmra.mrb[0].mxu0 %v504
    %v572 = vpop.f32.mrb[0].mxu0
    %v573 = vadd.f32 0.0, %v572
    %v574 = vpop.f32.mrb[0].mxu0
    %575 = vdwg.mxu0
    %v576 = vadd.f32 %v424, %v573
    %v577 = vadd.f32 %v576, %v190
    %v578 = vtanh.pop %v577
    %v580 = vsel %vm192, %v578, 0
    %582 = vmatprep.subr.mxu0 0.0
    %583 = vmatpush1.msra.mxu0 %v179
    %584 = vmatprep.subr.mxu0 0.0
    %585 = vmatpush1.msra.mxu0 %v180
    %586 = vmatprep.subr.mxu0 0.0
    %587 = vmatpush1.msra.mxu0 %v181
    %588 = vmatprep.subr.mxu0 0.0
    %589 = vmatpush1.msra.mxu0 %v182
    %590 = vmatprep.subr.mxu0 0.0
    %591 = vmatpush1.msra.mxu0 0.0
    %592 = vmatprep.subr.mxu0 0.0
    %593 = vmatpush1.msra.mxu0 0.0
    %594 = vmatprep.subr.mxu0 0.0
    %595 = vmatpush1.msra.mxu0 0.0
    %596 = vmatprep.subr.mxu0 0.0
    %597 = vmatpush1.msra.mxu0 0.0
    %598 = vmatprep.subr.mxu0 0.0
    %599 = vmatpush1.msra.mxu0 0.0
    %600 = vmatprep.subr.mxu0 0.0
    %601 = vmatpush1.msra.mxu0 0.0
    %602 = vmatprep.subr.mxu0 0.0
    %603 = vmatpush1.msra.mxu0 0.0
    %604 = vmatprep.subr.mxu0 0.0
    %605 = vmatpush1.msra.mxu0 0.0
    %606 = vmatprep.subr.mxu0 0.0
    %607 = vmatpush1.msra.mxu0 0.0
    %608 = vmatprep.subr.mxu0 0.0
    %609 = vmatpush1.msra.mxu0 0.0
    %610 = vmatprep.subr.mxu0 0.0
    %611 = vmatpush1.msra.mxu0 0.0
    %612 = vmatprep.subr.mxu0 0.0
    %613 = vmatpush1.msra.mxu0 0.0
    %614 = vmatprep.subr.mxu0 0.0
    %615 = vmatpush1.msra.mxu0 0.0
    %616 = vmatprep.subr.mxu0 0.0
    %617 = vmatpush1.msra.mxu0 0.0
    %618 = vmatprep.subr.mxu0 0.0
    %619 = vmatpush1.msra.mxu0 0.0
    %620 = vmatprep.subr.mxu0 0.0
    %621 = vmatpush1.msra.mxu0 0.0
    %622 = vmatprep.subr.mxu0 0.0
    %623 = vmatpush1.msra.mxu0 0.0
    %624 = vmatprep.subr.mxu0 0.0
    %625 = vmatpush1.msra.mxu0 0.0
    %626 = vmatprep.subr.mxu0 0.0
    %627 = vmatpush1.msra.mxu0 0.0
    %628 = vmatprep.subr.mxu0 0.0
    %629 = vmatpush1.msra.mxu0 0.0
    %630 = vmatprep.subr.mxu0 0.0
    %631 = vmatpush1.msra.mxu0 0.0
    %632 = vmatprep.subr.mxu0 0.0
    %633 = vmatpush1.msra.mxu0 0.0
    %634 = vmatprep.subr.mxu0 0.0
    %635 = vmatpush1.msra.mxu0 0.0
    %636 = vmatprep.subr.mxu0 0.0
    %637 = vmatpush1.msra.mxu0 0.0
    %638 = vmatprep.subr.mxu0 0.0
    %639 = vmatpush1.msra.mxu0 0.0
    %640 = vmatprep.subr.mxu0 0.0
    %641 = vmatpush1.msra.mxu0 0.0
    %642 = vmatprep.subr.mxu0 0.0
    %643 = vmatpush1.msra.mxu0 0.0
    %644 = vmatprep.subr.mxu0 0.0
    %645 = vmatpush1.msra.mxu0 0.0
    %646 = vmatprep.mubr.f32.mxu0 0.0
    %647 = vmatmul.mubr.f32.gmra.mrb[0].mxu0 %v580
    %v648 = vpop.f32.mrb[0].mxu0
    %v649 = vadd.f32 0.0, %v648
    %v650 = vpop.f32.mrb[0].mxu0
    %651 = vdwg.mxu0
    %v652 = vadd.f32 %v500, %v649
    %v653 = vadd.f32 %v652, %v271
    %v654 = vtanh.pop %v653
    %v655 = vadd.f32 %v502, %v151
    %v656 = vtanh.pop %v655
    %v658 = vsel %vm192, %v656, 0
    %660 = vmatprep.subr.mxu0 0.0
    %661 = vmatpush1.msra.mxu0 %v174
    %662 = vmatprep.subr.mxu0 0.0
    %663 = vmatpush1.msra.mxu0 %v175
    %664 = vmatprep.subr.mxu0 0.0
    %665 = vmatpush1.msra.mxu0 %v176
    %666 = vmatprep.subr.mxu0 0.0
    %667 = vmatpush1.msra.mxu0 %v177
    %668 = vmatprep.subr.mxu0 0.0
    %669 = vmatpush1.msra.mxu0 0.0
    %670 = vmatprep.subr.mxu0 0.0
    %671 = vmatpush1.msra.mxu0 0.0
    %672 = vmatprep.subr.mxu0 0.0
    %673 = vmatpush1.msra.mxu0 0.0
    %674 = vmatprep.subr.mxu0 0.0
    %675 = vmatpush1.msra.mxu0 0.0
    %676 = vmatprep.subr.mxu0 0.0
    %677 = vmatpush1.msra.mxu0 0.0
    %678 = vmatprep.subr.mxu0 0.0
    %679 = vmatpush1.msra.mxu0 0.0
    %680 = vmatprep.subr.mxu0 0.0
    %681 = vmatpush1.msra.mxu0 0.0
    %682 = vmatprep.subr.mxu0 0.0
    %683 = vmatpush1.msra.mxu0 0.0
    %684 = vmatprep.subr.mxu0 0.0
    %685 = vmatpush1.msra.mxu0 0.0
    %686 = vmatprep.subr.mxu0 0.0
    %687 = vmatpush1.msra.mxu0 0.0
    %688 = vmatprep.subr.mxu0 0.0
    %689 = vmatpush1.msra.mxu0 0.0
    %690 = vmatprep.subr.mxu0 0.0
    %691 = vmatpush1.msra.mxu0 0.0
    %692 = vmatprep.subr.mxu0 0.0
    %693 = vmatpush1.msra.mxu0 0.0
    %694 = vmatprep.subr.mxu0 0.0
    %695 = vmatpush1.msra.mxu0 0.0
    %696 = vmatprep.subr.mxu0 0.0
    %697 = vmatpush1.msra.mxu0 0.0
    %698 = vmatprep.subr.mxu0 0.0
    %699 = vmatpush1.msra.mxu0 0.0
    %700 = vmatprep.subr.mxu0 0.0
    %701 = vmatpush1.msra.mxu0 0.0
    %702 = vmatprep.subr.mxu0 0.0
    %703 = vmatpush1.msra.mxu0 0.0
    %704 = vmatprep.subr.mxu0 0.0
    %705 = vmatpush1.msra.mxu0 0.0
    %706 = vmatprep.subr.mxu0 0.0
    %707 = vmatpush1.msra.mxu0 0.0
    %708 = vmatprep.subr.mxu0 0.0
    %709 = vmatpush1.msra.mxu0 0.0
    %710 = vmatprep.subr.mxu0 0.0
    %711 = vmatpush1.msra.mxu0 0.0
    %712 = vmatprep.subr.mxu0 0.0
    %713 = vmatpush1.msra.mxu0 0.0
    %714 = vmatprep.subr.mxu0 0.0
    %715 = vmatpush1.msra.mxu0 0.0
    %716 = vmatprep.subr.mxu0 0.0
    %717 = vmatpush1.msra.mxu0 0.0
    %718 = vmatprep.subr.mxu0 0.0
    %719 = vmatpush1.msra.mxu0 0.0
    %720 = vmatprep.subr.mxu0 0.0
    %721 = vmatpush1.msra.mxu0 0.0
    %722 = vmatprep.subr.mxu0 0.0
    %723 = vmatpush1.msra.mxu0 0.0
    %724 = vmatprep.mubr.f32.mxu0 0.0
    %725 = vmatmul.mubr.f32.gmra.mrb[0].mxu0 %v658
    %v726 = vpop.f32.mrb[0].mxu0
    %v727 = vadd.f32 0.0, %v726
    %v728 = vpop.f32.mrb[0].mxu0
    %729 = vdwg.mxu0
    %v730 = vadd.f32 %v578, %v727
    %v731 = vadd.f32 %v730, %v190
    %v732 = vtanh.pop %v731
    %v734 = vsel %vm192, %v732, 0
    %736 = vmatprep.subr.mxu0 0.0
    %737 = vmatpush1.msra.mxu0 %v179
    %738 = vmatprep.subr.mxu0 0.0
    %739 = vmatpush1.msra.mxu0 %v180
    %740 = vmatprep.subr.mxu0 0.0
    %741 = vmatpush1.msra.mxu0 %v181
    %742 = vmatprep.subr.mxu0 0.0
    %743 = vmatpush1.msra.mxu0 %v182
    %744 = vmatprep.subr.mxu0 0.0
    %745 = vmatpush1.msra.mxu0 0.0
    %746 = vmatprep.subr.mxu0 0.0
    %747 = vmatpush1.msra.mxu0 0.0
    %748 = vmatprep.subr.mxu0 0.0
    %749 = vmatpush1.msra.mxu0 0.0
    %750 = vmatprep.subr.mxu0 0.0
    %751 = vmatpush1.msra.mxu0 0.0
    %752 = vmatprep.subr.mxu0 0.0
    %753 = vmatpush1.msra.mxu0 0.0
    %754 = vmatprep.subr.mxu0 0.0
    %755 = vmatpush1.msra.mxu0 0.0
    %756 = vmatprep.subr.mxu0 0.0
    %757 = vmatpush1.msra.mxu0 0.0
    %758 = vmatprep.subr.mxu0 0.0
    %759 = vmatpush1.msra.mxu0 0.0
    %760 = vmatprep.subr.mxu0 0.0
    %761 = vmatpush1.msra.mxu0 0.0
    %762 = vmatprep.subr.mxu0 0.0
    %763 = vmatpush1.msra.mxu0 0.0
    %764 = vmatprep.subr.mxu0 0.0
    %765 = vmatpush1.msra.mxu0 0.0
    %766 = vmatprep.subr.mxu0 0.0
    %767 = vmatpush1.msra.mxu0 0.0
    %768 = vmatprep.subr.mxu0 0.0
    %769 = vmatpush1.msra.mxu0 0.0
    %770 = vmatprep.subr.mxu0 0.0
    %771 = vmatpush1.msra.mxu0 0.0
    %772 = vmatprep.subr.mxu0 0.0
    %773 = vmatpush1.msra.mxu0 0.0
    %774 = vmatprep.subr.mxu0 0.0
    %775 = vmatpush1.msra.mxu0 0.0
    %776 = vmatprep.subr.mxu0 0.0
    %777 = vmatpush1.msra.mxu0 0.0
    %778 = vmatprep.subr.mxu0 0.0
    %779 = vmatpush1.msra.mxu0 0.0
    %780 = vmatprep.subr.mxu0 0.0
    %781 = vmatpush1.msra.mxu0 0.0
    %782 = vmatprep.subr.mxu0 0.0
    %783 = vmatpush1.msra.mxu0 0.0
    %784 = vmatprep.subr.mxu0 0.0
    %785 = vmatpush1.msra.mxu0 0.0
    %786 = vmatprep.subr.mxu0 0.0
    %787 = vmatpush1.msra.mxu0 0.0
    %788 = vmatprep.subr.mxu0 0.0
    %789 = vmatpush1.msra.mxu0 0.0
    %790 = vmatprep.subr.mxu0 0.0
    %791 = vmatpush1.msra.mxu0 0.0
    %792 = vmatprep.subr.mxu0 0.0
    %793 = vmatpush1.msra.mxu0 0.0
    %794 = vmatprep.subr.mxu0 0.0
    %795 = vmatpush1.msra.mxu0 0.0
    %796 = vmatprep.subr.mxu0 0.0
    %797 = vmatpush1.msra.mxu0 0.0
    %798 = vmatprep.subr.mxu0 0.0
    %799 = vmatpush1.msra.mxu0 0.0
    %800 = vmatprep.mubr.f32.mxu0 0.0
    %801 = vmatmul.mubr.f32.gmra.mrb[0].mxu0 %v734
    %v802 = vpop.f32.mrb[0].mxu0
    %v803 = vadd.f32 0.0, %v802
    %v804 = vpop.f32.mrb[0].mxu0
    %805 = vdwg.mxu0
    %v806 = vadd.f32 %v654, %v803
    %v807 = vadd.f32 %v806, %v271
    %v808 = vtanh.pop %v807
    %v809 = vadd.f32 %v656, %v156
    %v810 = vtanh.pop %v809
    %v812 = vsel %vm192, %v810, 0
    %814 = vmatprep.subr.mxu0 0.0
    %815 = vmatpush1.msra.mxu0 %v174
    %816 = vmatprep.subr.mxu0 0.0
    %817 = vmatpush1.msra.mxu0 %v175
    %818 = vmatprep.subr.mxu0 0.0
    %819 = vmatpush1.msra.mxu0 %v176
    %820 = vmatprep.subr.mxu0 0.0
    %821 = vmatpush1.msra.mxu0 %v177
    %822 = vmatprep.subr.mxu0 0.0
    %823 = vmatpush1.msra.mxu0 0.0
    %824 = vmatprep.subr.mxu0 0.0
    %825 = vmatpush1.msra.mxu0 0.0
    %826 = vmatprep.subr.mxu0 0.0
    %827 = vmatpush1.msra.mxu0 0.0
    %828 = vmatprep.subr.mxu0 0.0
    %829 = vmatpush1.msra.mxu0 0.0
    %830 = vmatprep.subr.mxu0 0.0
    %831 = vmatpush1.msra.mxu0 0.0
    %832 = vmatprep.subr.mxu0 0.0
    %833 = vmatpush1.msra.mxu0 0.0
    %834 = vmatprep.subr.mxu0 0.0
    %835 = vmatpush1.msra.mxu0 0.0
    %836 = vmatprep.subr.mxu0 0.0
    %837 = vmatpush1.msra.mxu0 0.0
    %838 = vmatprep.subr.mxu0 0.0
    %839 = vmatpush1.msra.mxu0 0.0
    %840 = vmatprep.subr.mxu0 0.0
    %841 = vmatpush1.msra.mxu0 0.0
    %842 = vmatprep.subr.mxu0 0.0
    %843 = vmatpush1.msra.mxu0 0.0
    %844 = vmatprep.subr.mxu0 0.0
    %845 = vmatpush1.msra.mxu0 0.0
    %846 = vmatprep.subr.mxu0 0.0
    %847 = vmatpush1.msra.mxu0 0.0
    %848 = vmatprep.subr.mxu0 0.0
    %849 = vmatpush1.msra.mxu0 0.0
    %850 = vmatprep.subr.mxu0 0.0
    %851 = vmatpush1.msra.mxu0 0.0
    %852 = vmatprep.subr.mxu0 0.0
    %853 = vmatpush1.msra.mxu0 0.0
    %854 = vmatprep.subr.mxu0 0.0
    %855 = vmatpush1.msra.mxu0 0.0
    %856 = vmatprep.subr.mxu0 0.0
    %857 = vmatpush1.msra.mxu0 0.0
    %858 = vmatprep.subr.mxu0 0.0
    %859 = vmatpush1.msra.mxu0 0.0
    %860 = vmatprep.subr.mxu0 0.0
    %861 = vmatpush1.msra.mxu0 0.0
    %862 = vmatprep.subr.mxu0 0.0
    %863 = vmatpush1.msra.mxu0 0.0
    %864 = vmatprep.subr.mxu0 0.0
    %865 = vmatpush1.msra.mxu0 0.0
    %866 = vmatprep.subr.mxu0 0.0
    %867 = vmatpush1.msra.mxu0 0.0
    %868 = vmatprep.subr.mxu0 0.0
    %869 = vmatpush1.msra.mxu0 0.0
    %870 = vmatprep.subr.mxu0 0.0
    %871 = vmatpush1.msra.mxu0 0.0
    %872 = vmatprep.subr.mxu0 0.0
    %873 = vmatpush1.msra.mxu0 0.0
    %874 = vmatprep.subr.mxu0 0.0
    %875 = vmatpush1.msra.mxu0 0.0
    %876 = vmatprep.subr.mxu0 0.0
    %877 = vmatpush1.msra.mxu0 0.0
    %878 = vmatprep.mubr.f32.mxu0 0.0
    %879 = vmatmul.mubr.f32.gmra.mrb[0].mxu0 %v812
    %v880 = vpop.f32.mrb[0].mxu0
    %v881 = vadd.f32 0.0, %v880
    %v882 = vpop.f32.mrb[0].mxu0
    %883 = vdwg.mxu0
    %v884 = vadd.f32 %v732, %v881
    %v885 = vadd.f32 %v884, %v190
    %v886 = vtanh.pop %v885
    %v888 = vsel %vm192, %v886, 0
    %890 = vmatprep.subr.mxu0 0.0
    %891 = vmatpush1.msra.mxu0 %v179
    %892 = vmatprep.subr.mxu0 0.0
    %893 = vmatpush1.msra.mxu0 %v180
    %894 = vmatprep.subr.mxu0 0.0
    %895 = vmatpush1.msra.mxu0 %v181
    %896 = vmatprep.subr.mxu0 0.0
    %897 = vmatpush1.msra.mxu0 %v182
    %898 = vmatprep.subr.mxu0 0.0
    %899 = vmatpush1.msra.mxu0 0.0
    %900 = vmatprep.subr.mxu0 0.0
    %901 = vmatpush1.msra.mxu0 0.0
    %902 = vmatprep.subr.mxu0 0.0
    %903 = vmatpush1.msra.mxu0 0.0
    %904 = vmatprep.subr.mxu0 0.0
    %905 = vmatpush1.msra.mxu0 0.0
    %906 = vmatprep.subr.mxu0 0.0
    %907 = vmatpush1.msra.mxu0 0.0
    %908 = vmatprep.subr.mxu0 0.0
    %909 = vmatpush1.msra.mxu0 0.0
    %910 = vmatprep.subr.mxu0 0.0
    %911 = vmatpush1.msra.mxu0 0.0
    %912 = vmatprep.subr.mxu0 0.0
    %913 = vmatpush1.msra.mxu0 0.0
    %914 = vmatprep.subr.mxu0 0.0
    %915 = vmatpush1.msra.mxu0 0.0
    %916 = vmatprep.subr.mxu0 0.0
    %917 = vmatpush1.msra.mxu0 0.0
    %918 = vmatprep.subr.mxu0 0.0
    %919 = vmatpush1.msra.mxu0 0.0
    %920 = vmatprep.subr.mxu0 0.0
    %921 = vmatpush1.msra.mxu0 0.0
    %922 = vmatprep.subr.mxu0 0.0
    %923 = vmatpush1.msra.mxu0 0.0
    %924 = vmatprep.subr.mxu0 0.0
    %925 = vmatpush1.msra.mxu0 0.0
    %926 = vmatprep.subr.mxu0 0.0
    %927 = vmatpush1.msra.mxu0 0.0
    %928 = vmatprep.subr.mxu0 0.0
    %929 = vmatpush1.msra.mxu0 0.0
    %930 = vmatprep.subr.mxu0 0.0
    %931 = vmatpush1.msra.mxu0 0.0
    %932 = vmatprep.subr.mxu0 0.0
    %933 = vmatpush1.msra.mxu0 0.0
    %934 = vmatprep.subr.mxu0 0.0
    %935 = vmatpush1.msra.mxu0 0.0
    %936 = vmatprep.subr.mxu0 0.0
    %937 = vmatpush1.msra.mxu0 0.0
    %938 = vmatprep.subr.mxu0 0.0
    %939 = vmatpush1.msra.mxu0 0.0
    %940 = vmatprep.subr.mxu0 0.0
    %941 = vmatpush1.msra.mxu0 0.0
    %942 = vmatprep.subr.mxu0 0.0
    %943 = vmatpush1.msra.mxu0 0.0
    %944 = vmatprep.subr.mxu0 0.0
    %945 = vmatpush1.msra.mxu0 0.0
    %946 = vmatprep.subr.mxu0 0.0
    %947 = vmatpush1.msra.mxu0 0.0
    %948 = vmatprep.subr.mxu0 0.0
    %949 = vmatpush1.msra.mxu0 0.0
    %950 = vmatprep.subr.mxu0 0.0
    %951 = vmatpush1.msra.mxu0 0.0
    %952 = vmatprep.subr.mxu0 0.0
    %953 = vmatpush1.msra.mxu0 0.0
    %954 = vmatprep.mubr.f32.mxu0 0.0
    %955 = vmatmul.mubr.f32.gmra.mrb[0].mxu0 %v888
    %v956 = vpop.f32.mrb[0].mxu0
    %v957 = vadd.f32 0.0, %v956
    %v958 = vpop.f32.mrb[0].mxu0
    %959 = vdwg.mxu0
    %v960 = vadd.f32 %v808, %v957
    %v961 = vadd.f32 %v960, %v271
    %v962 = vtanh.pop %v961
    %v963 = vadd.f32 %v810, %v161
    %v964 = vtanh.pop %v963
    %v966 = vsel %vm192, %v964, 0
    %968 = vmatprep.subr.mxu0 0.0
    %969 = vmatpush1.msra.mxu0 %v174
    %970 = vmatprep.subr.mxu0 0.0
    %971 = vmatpush1.msra.mxu0 %v175
    %972 = vmatprep.subr.mxu0 0.0
    %973 = vmatpush1.msra.mxu0 %v176
    %974 = vmatprep.subr.mxu0 0.0
    %975 = vmatpush1.msra.mxu0 %v177
    %976 = vmatprep.subr.mxu0 0.0
    %977 = vmatpush1.msra.mxu0 0.0
    %978 = vmatprep.subr.mxu0 0.0
    %979 = vmatpush1.msra.mxu0 0.0
    %980 = vmatprep.subr.mxu0 0.0
    %981 = vmatpush1.msra.mxu0 0.0
    %982 = vmatprep.subr.mxu0 0.0
    %983 = vmatpush1.msra.mxu0 0.0
    %984 = vmatprep.subr.mxu0 0.0
    %985 = vmatpush1.msra.mxu0 0.0
    %986 = vmatprep.subr.mxu0 0.0
    %987 = vmatpush1.msra.mxu0 0.0
    %988 = vmatprep.subr.mxu0 0.0
    %989 = vmatpush1.msra.mxu0 0.0
    %990 = vmatprep.subr.mxu0 0.0
    %991 = vmatpush1.msra.mxu0 0.0
    %992 = vmatprep.subr.mxu0 0.0
    %993 = vmatpush1.msra.mxu0 0.0
    %994 = vmatprep.subr.mxu0 0.0
    %995 = vmatpush1.msra.mxu0 0.0
    %996 = vmatprep.subr.mxu0 0.0
    %997 = vmatpush1.msra.mxu0 0.0
    %998 = vmatprep.subr.mxu0 0.0
    %999 = vmatpush1.msra.mxu0 0.0
    %1000 = vmatprep.subr.mxu0 0.0
    %1001 = vmatpush1.msra.mxu0 0.0
    %1002 = vmatprep.subr.mxu0 0.0
    %1003 = vmatpush1.msra.mxu0 0.0
    %1004 = vmatprep.subr.mxu0 0.0
    %1005 = vmatpush1.msra.mxu0 0.0
    %1006 = vmatprep.subr.mxu0 0.0
    %1007 = vmatpush1.msra.mxu0 0.0
    %1008 = vmatprep.subr.mxu0 0.0
    %1009 = vmatpush1.msra.mxu0 0.0
    %1010 = vmatprep.subr.mxu0 0.0
    %1011 = vmatpush1.msra.mxu0 0.0
    %1012 = vmatprep.subr.mxu0 0.0
    %1013 = vmatpush1.msra.mxu0 0.0
    %1014 = vmatprep.subr.mxu0 0.0
    %1015 = vmatpush1.msra.mxu0 0.0
    %1016 = vmatprep.subr.mxu0 0.0
    %1017 = vmatpush1.msra.mxu0 0.0
    %1018 = vmatprep.subr.mxu0 0.0
    %1019 = vmatpush1.msra.mxu0 0.0
    %1020 = vmatprep.subr.mxu0 0.0
    %1021 = vmatpush1.msra.mxu0 0.0
    %1022 = vmatprep.subr.mxu0 0.0
    %1023 = vmatpush1.msra.mxu0 0.0
    %1024 = vmatprep.subr.mxu0 0.0
    %1025 = vmatpush1.msra.mxu0 0.0
    %1026 = vmatprep.subr.mxu0 0.0
    %1027 = vmatpush1.msra.mxu0 0.0
    %1028 = vmatprep.subr.mxu0 0.0
    %1029 = vmatpush1.msra.mxu0 0.0
    %1030 = vmatprep.subr.mxu0 0.0
    %1031 = vmatpush1.msra.mxu0 0.0
    %1032 = vmatprep.mubr.f32.mxu0 0.0
    %1033 = vmatmul.mubr.f32.gmra.mrb[0].mxu0 %v966
    %v1034 = vpop.f32.mrb[0].mxu0
    %v1035 = vadd.f32 0.0, %v1034
    %v1036 = vpop.f32.mrb[0].mxu0
    %1037 = vdwg.mxu0
    %v1038 = vadd.f32 %v886, %v1035
    %v1039 = vadd.f32 %v1038, %v190
    %v1040 = vtanh.pop %v1039
    %v1042 = vsel %vm192, %v1040, 0
    %1044 = vmatprep.subr.mxu0 0.0
    %1045 = vmatpush1.msra.mxu0 %v179
    %1046 = vmatprep.subr.mxu0 0.0
    %1047 = vmatpush1.msra.mxu0 %v180
    %1048 = vmatprep.subr.mxu0 0.0
    %1049 = vmatpush1.msra.mxu0 %v181
    %1050 = vmatprep.subr.mxu0 0.0
    %1051 = vmatpush1.msra.mxu0 %v182
    %1052 = vmatprep.subr.mxu0 0.0
    %1053 = vmatpush1.msra.mxu0 0.0
    %1054 = vmatprep.subr.mxu0 0.0
    %1055 = vmatpush1.msra.mxu0 0.0
    %1056 = vmatprep.subr.mxu0 0.0
    %1057 = vmatpush1.msra.mxu0 0.0
    %1058 = vmatprep.subr.mxu0 0.0
    %1059 = vmatpush1.msra.mxu0 0.0
    %1060 = vmatprep.subr.mxu0 0.0
    %1061 = vmatpush1.msra.mxu0 0.0
    %1062 = vmatprep.subr.mxu0 0.0
    %1063 = vmatpush1.msra.mxu0 0.0
    %1064 = vmatprep.subr.mxu0 0.0
    %1065 = vmatpush1.msra.mxu0 0.0
    %1066 = vmatprep.subr.mxu0 0.0
    %1067 = vmatpush1.msra.mxu0 0.0
    %1068 = vmatprep.subr.mxu0 0.0
    %1069 = vmatpush1.msra.mxu0 0.0
    %1070 = vmatprep.subr.mxu0 0.0
    %1071 = vmatpush1.msra.mxu0 0.0
    %1072 = vmatprep.subr.mxu0 0.0
    %1073 = vmatpush1.msra.mxu0 0.0
    %1074 = vmatprep.subr.mxu0 0.0
    %1075 = vmatpush1.msra.mxu0 0.0
    %1076 = vmatprep.subr.mxu0 0.0
    %1077 = vmatpush1.msra.mxu0 0.0
    %1078 = vmatprep.subr.mxu0 0.0
    %1079 = vmatpush1.msra.mxu0 0.0
    %1080 = vmatprep.subr.mxu0 0.0
    %1081 = vmatpush1.msra.mxu0 0.0
    %1082 = vmatprep.subr.mxu0 0.0
    %1083 = vmatpush1.msra.mxu0 0.0
    %1084 = vmatprep.subr.mxu0 0.0
    %1085 = vmatpush1.msra.mxu0 0.0
    %1086 = vmatprep.subr.mxu0 0.0
    %1087 = vmatpush1.msra.mxu0 0.0
    %1088 = vmatprep.subr.mxu0 0.0
    %1089 = vmatpush1.msra.mxu0 0.0
    %1090 = vmatprep.subr.mxu0 0.0
    %1091 = vmatpush1.msra.mxu0 0.0
    %1092 = vmatprep.subr.mxu0 0.0
    %1093 = vmatpush1.msra.mxu0 0.0
    %1094 = vmatprep.subr.mxu0 0.0
    %1095 = vmatpush1.msra.mxu0 0.0
    %1096 = vmatprep.subr.mxu0 0.0
    %1097 = vmatpush1.msra.mxu0 0.0
    %1098 = vmatprep.subr.mxu0 0.0
    %1099 = vmatpush1.msra.mxu0 0.0
    %1100 = vmatprep.subr.mxu0 0.0
    %1101 = vmatpush1.msra.mxu0 0.0
    %1102 = vmatprep.subr.mxu0 0.0
    %1103 = vmatpush1.msra.mxu0 0.0
    %1104 = vmatprep.subr.mxu0 0.0
    %1105 = vmatpush1.msra.mxu0 0.0
    %1106 = vmatprep.subr.mxu0 0.0
    %1107 = vmatpush1.msra.mxu0 0.0
    %1108 = vmatprep.mubr.f32.mxu0 0.0
    %1109 = vmatmul.mubr.f32.gmra.mrb[0].mxu0 %v1042
    %v1110 = vpop.f32.mrb[0].mxu0
    %v1111 = vadd.f32 0.0, %v1110
    %v1112 = vpop.f32.mrb[0].mxu0
    %1113 = vdwg.mxu0
    %v1114 = vadd.f32 %v962, %v1111
    %v1115 = vadd.f32 %v1114, %v271
    %v1116 = vtanh.pop %v1115
    %v1117 = vadd.f32 %v964, %v166
    %v1118 = vtanh.pop %v1117
    %v1120 = vsel %vm192, %v1118, 0
    %1122 = vmatprep.subr.mxu0 0.0
    %1123 = vmatpush1.msra.mxu0 %v174
    %1124 = vmatprep.subr.mxu0 0.0
    %1125 = vmatpush1.msra.mxu0 %v175
    %1126 = vmatprep.subr.mxu0 0.0
    %1127 = vmatpush1.msra.mxu0 %v176
    %1128 = vmatprep.subr.mxu0 0.0
    %1129 = vmatpush1.msra.mxu0 %v177
    %1130 = vmatprep.subr.mxu0 0.0
    %1131 = vmatpush1.msra.mxu0 0.0
    %1132 = vmatprep.subr.mxu0 0.0
    %1133 = vmatpush1.msra.mxu0 0.0
    %1134 = vmatprep.subr.mxu0 0.0
    %1135 = vmatpush1.msra.mxu0 0.0
    %1136 = vmatprep.subr.mxu0 0.0
    %1137 = vmatpush1.msra.mxu0 0.0
    %1138 = vmatprep.subr.mxu0 0.0
    %1139 = vmatpush1.msra.mxu0 0.0
    %1140 = vmatprep.subr.mxu0 0.0
    %1141 = vmatpush1.msra.mxu0 0.0
    %1142 = vmatprep.subr.mxu0 0.0
    %1143 = vmatpush1.msra.mxu0 0.0
    %1144 = vmatprep.subr.mxu0 0.0
    %1145 = vmatpush1.msra.mxu0 0.0
    %1146 = vmatprep.subr.mxu0 0.0
    %1147 = vmatpush1.msra.mxu0 0.0
    %1148 = vmatprep.subr.mxu0 0.0
    %1149 = vmatpush1.msra.mxu0 0.0
    %1150 = vmatprep.subr.mxu0 0.0
    %1151 = vmatpush1.msra.mxu0 0.0
    %1152 = vmatprep.subr.mxu0 0.0
    %1153 = vmatpush1.msra.mxu0 0.0
    %1154 = vmatprep.subr.mxu0 0.0
    %1155 = vmatpush1.msra.mxu0 0.0
    %1156 = vmatprep.subr.mxu0 0.0
    %1157 = vmatpush1.msra.mxu0 0.0
    %1158 = vmatprep.subr.mxu0 0.0
    %1159 = vmatpush1.msra.mxu0 0.0
    %1160 = vmatprep.subr.mxu0 0.0
    %1161 = vmatpush1.msra.mxu0 0.0
    %1162 = vmatprep.subr.mxu0 0.0
    %1163 = vmatpush1.msra.mxu0 0.0
    %1164 = vmatprep.subr.mxu0 0.0
    %1165 = vmatpush1.msra.mxu0 0.0
    %1166 = vmatprep.subr.mxu0 0.0
    %1167 = vmatpush1.msra.mxu0 0.0
    %1168 = vmatprep.subr.mxu0 0.0
    %1169 = vmatpush1.msra.mxu0 0.0
    %1170 = vmatprep.subr.mxu0 0.0
    %1171 = vmatpush1.msra.mxu0 0.0
    %1172 = vmatprep.subr.mxu0 0.0
    %1173 = vmatpush1.msra.mxu0 0.0
    %1174 = vmatprep.subr.mxu0 0.0
    %1175 = vmatpush1.msra.mxu0 0.0
    %1176 = vmatprep.subr.mxu0 0.0
    %1177 = vmatpush1.msra.mxu0 0.0
    %1178 = vmatprep.subr.mxu0 0.0
    %1179 = vmatpush1.msra.mxu0 0.0
    %1180 = vmatprep.subr.mxu0 0.0
    %1181 = vmatpush1.msra.mxu0 0.0
    %1182 = vmatprep.subr.mxu0 0.0
    %1183 = vmatpush1.msra.mxu0 0.0
    %1184 = vmatprep.subr.mxu0 0.0
    %1185 = vmatpush1.msra.mxu0 0.0
    %1186 = vmatprep.mubr.f32.mxu0 0.0
    %1187 = vmatmul.mubr.f32.gmra.mrb[0].mxu0 %v1120
    %v1188 = vpop.f32.mrb[0].mxu0
    %v1189 = vadd.f32 0.0, %v1188
    %v1190 = vpop.f32.mrb[0].mxu0
    %1191 = vdwg.mxu0
    %v1192 = vadd.f32 %v1040, %v1189
    %v1193 = vadd.f32 %v1192, %v190
    %v1194 = vtanh.pop %v1193
    %v1196 = vsel %vm192, %v1194, 0
    %1198 = vmatprep.subr.mxu0 0.0
    %1199 = vmatpush1.msra.mxu0 %v179
    %1200 = vmatprep.subr.mxu0 0.0
    %1201 = vmatpush1.msra.mxu0 %v180
    %1202 = vmatprep.subr.mxu0 0.0
    %1203 = vmatpush1.msra.mxu0 %v181
    %1204 = vmatprep.subr.mxu0 0.0
    %1205 = vmatpush1.msra.mxu0 %v182
    %1206 = vmatprep.subr.mxu0 0.0
    %1207 = vmatpush1.msra.mxu0 0.0
    %1208 = vmatprep.subr.mxu0 0.0
    %1209 = vmatpush1.msra.mxu0 0.0
    %1210 = vmatprep.subr.mxu0 0.0
    %1211 = vmatpush1.msra.mxu0 0.0
    %1212 = vmatprep.subr.mxu0 0.0
    %1213 = vmatpush1.msra.mxu0 0.0
    %1214 = vmatprep.subr.mxu0 0.0
    %1215 = vmatpush1.msra.mxu0 0.0
    %1216 = vmatprep.subr.mxu0 0.0
    %1217 = vmatpush1.msra.mxu0 0.0
    %1218 = vmatprep.subr.mxu0 0.0
    %1219 = vmatpush1.msra.mxu0 0.0
    %1220 = vmatprep.subr.mxu0 0.0
    %1221 = vmatpush1.msra.mxu0 0.0
    %1222 = vmatprep.subr.mxu0 0.0
    %1223 = vmatpush1.msra.mxu0 0.0
    %1224 = vmatprep.subr.mxu0 0.0
    %1225 = vmatpush1.msra.mxu0 0.0
    %1226 = vmatprep.subr.mxu0 0.0
    %1227 = vmatpush1.msra.mxu0 0.0
    %1228 = vmatprep.subr.mxu0 0.0
    %1229 = vmatpush1.msra.mxu0 0.0
    %1230 = vmatprep.subr.mxu0 0.0
    %1231 = vmatpush1.msra.mxu0 0.0
    %1232 = vmatprep.subr.mxu0 0.0
    %1233 = vmatpush1.msra.mxu0 0.0
    %1234 = vmatprep.subr.mxu0 0.0
    %1235 = vmatpush1.msra.mxu0 0.0
    %1236 = vmatprep.subr.mxu0 0.0
    %1237 = vmatpush1.msra.mxu0 0.0
    %1238 = vmatprep.subr.mxu0 0.0
    %1239 = vmatpush1.msra.mxu0 0.0
    %1240 = vmatprep.subr.mxu0 0.0
    %1241 = vmatpush1.msra.mxu0 0.0
    %1242 = vmatprep.subr.mxu0 0.0
    %1243 = vmatpush1.msra.mxu0 0.0
    %1244 = vmatprep.subr.mxu0 0.0
    %1245 = vmatpush1.msra.mxu0 0.0
    %1246 = vmatprep.subr.mxu0 0.0
    %1247 = vmatpush1.msra.mxu0 0.0
    %1248 = vmatprep.subr.mxu0 0.0
    %1249 = vmatpush1.msra.mxu0 0.0
    %1250 = vmatprep.subr.mxu0 0.0
    %1251 = vmatpush1.msra.mxu0 0.0
    %1252 = vmatprep.subr.mxu0 0.0
    %1253 = vmatpush1.msra.mxu0 0.0
    %1254 = vmatprep.subr.mxu0 0.0
    %1255 = vmatpush1.msra.mxu0 0.0
    %1256 = vmatprep.subr.mxu0 0.0
    %1257 = vmatpush1.msra.mxu0 0.0
    %1258 = vmatprep.subr.mxu0 0.0
    %1259 = vmatpush1.msra.mxu0 0.0
    %1260 = vmatprep.subr.mxu0 0.0
    %1261 = vmatpush1.msra.mxu0 0.0
    %1262 = vmatprep.mubr.f32.mxu0 0.0
    %1263 = vmatmul.mubr.f32.gmra.mrb[0].mxu0 %v1196
    %v1264 = vpop.f32.mrb[0].mxu0
    %v1265 = vadd.f32 0.0, %v1264
    %v1266 = vpop.f32.mrb[0].mxu0
    %1267 = vdwg.mxu0
    %v1268 = vadd.f32 %v1116, %v1265
    %v1269 = vadd.f32 %v1268, %v271
    %v1270 = vtanh.pop %v1269
    %v1271 = vadd.f32 %v1118, %v171
    %v1272 = vtanh.pop %v1271
    %v1274 = vsel %vm192, %v1272, 0
    %1276 = vmatprep.subr.mxu0 0.0
    %1277 = vmatpush1.msra.mxu0 %v174
    %1278 = vmatprep.subr.mxu0 0.0
    %1279 = vmatpush1.msra.mxu0 %v175
    %1280 = vmatprep.subr.mxu0 0.0
    %1281 = vmatpush1.msra.mxu0 %v176
    %1282 = vmatprep.subr.mxu0 0.0
    %1283 = vmatpush1.msra.mxu0 %v177
    %1284 = vmatprep.subr.mxu0 0.0
    %1285 = vmatpush1.msra.mxu0 0.0
    %1286 = vmatprep.subr.mxu0 0.0
    %1287 = vmatpush1.msra.mxu0 0.0
    %1288 = vmatprep.subr.mxu0 0.0
    %1289 = vmatpush1.msra.mxu0 0.0
    %1290 = vmatprep.subr.mxu0 0.0
    %1291 = vmatpush1.msra.mxu0 0.0
    %1292 = vmatprep.subr.mxu0 0.0
    %1293 = vmatpush1.msra.mxu0 0.0
    %1294 = vmatprep.subr.mxu0 0.0
    %1295 = vmatpush1.msra.mxu0 0.0
    %1296 = vmatprep.subr.mxu0 0.0
    %1297 = vmatpush1.msra.mxu0 0.0
    %1298 = vmatprep.subr.mxu0 0.0
    %1299 = vmatpush1.msra.mxu0 0.0
    %1300 = vmatprep.subr.mxu0 0.0
    %1301 = vmatpush1.msra.mxu0 0.0
    %1302 = vmatprep.subr.mxu0 0.0
    %1303 = vmatpush1.msra.mxu0 0.0
    %1304 = vmatprep.subr.mxu0 0.0
    %1305 = vmatpush1.msra.mxu0 0.0
    %1306 = vmatprep.subr.mxu0 0.0
    %1307 = vmatpush1.msra.mxu0 0.0
    %1308 = vmatprep.subr.mxu0 0.0
    %1309 = vmatpush1.msra.mxu0 0.0
    %1310 = vmatprep.subr.mxu0 0.0
    %1311 = vmatpush1.msra.mxu0 0.0
    %1312 = vmatprep.subr.mxu0 0.0
    %1313 = vmatpush1.msra.mxu0 0.0
    %1314 = vmatprep.subr.mxu0 0.0
    %1315 = vmatpush1.msra.mxu0 0.0
    %1316 = vmatprep.subr.mxu0 0.0
    %1317 = vmatpush1.msra.mxu0 0.0
    %1318 = vmatprep.subr.mxu0 0.0
    %1319 = vmatpush1.msra.mxu0 0.0
    %1320 = vmatprep.subr.mxu0 0.0
    %1321 = vmatpush1.msra.mxu0 0.0
    %1322 = vmatprep.subr.mxu0 0.0
    %1323 = vmatpush1.msra.mxu0 0.0
    %1324 = vmatprep.subr.mxu0 0.0
    %1325 = vmatpush1.msra.mxu0 0.0
    %1326 = vmatprep.subr.mxu0 0.0
    %1327 = vmatpush1.msra.mxu0 0.0
    %1328 = vmatprep.subr.mxu0 0.0
    %1329 = vmatpush1.msra.mxu0 0.0
    %1330 = vmatprep.subr.mxu0 0.0
    %1331 = vmatpush1.msra.mxu0 0.0
    %1332 = vmatprep.subr.mxu0 0.0
    %1333 = vmatpush1.msra.mxu0 0.0
    %1334 = vmatprep.subr.mxu0 0.0
    %1335 = vmatpush1.msra.mxu0 0.0
    %1336 = vmatprep.subr.mxu0 0.0
    %1337 = vmatpush1.msra.mxu0 0.0
    %1338 = vmatprep.subr.mxu0 0.0
    %1339 = vmatpush1.msra.mxu0 0.0
    %1340 = vmatprep.mubr.f32.mxu0 0.0
    %1341 = vmatmul.mubr.f32.gmra.mrb[0].mxu0 %v1274
    %v1342 = vpop.f32.mrb[0].mxu0
    %v1343 = vadd.f32 0.0, %v1342
    %v1344 = vpop.f32.mrb[0].mxu0
    %1345 = vdwg.mxu0
    %v1346 = vadd.f32 %v1194, %v1343
    %v1347 = vadd.f32 %v1346, %v190
    %v1348 = vtanh.pop %v1347
    %v1350 = vsel %vm192, %v1348, 0
    %1352 = vmatprep.subr.mxu0 0.0
    %1353 = vmatpush1.msra.mxu0 %v179
    %1354 = vmatprep.subr.mxu0 0.0
    %1355 = vmatpush1.msra.mxu0 %v180
    %1356 = vmatprep.subr.mxu0 0.0
    %1357 = vmatpush1.msra.mxu0 %v181
    %1358 = vmatprep.subr.mxu0 0.0
    %1359 = vmatpush1.msra.mxu0 %v182
    %1360 = vmatprep.subr.mxu0 0.0
    %1361 = vmatpush1.msra.mxu0 0.0
    %1362 = vmatprep.subr.mxu0 0.0
    %1363 = vmatpush1.msra.mxu0 0.0
    %1364 = vmatprep.subr.mxu0 0.0
    %1365 = vmatpush1.msra.mxu0 0.0
    %1366 = vmatprep.subr.mxu0 0.0
    %1367 = vmatpush1.msra.mxu0 0.0
    %1368 = vmatprep.subr.mxu0 0.0
    %1369 = vmatpush1.msra.mxu0 0.0
    %1370 = vmatprep.subr.mxu0 0.0
    %1371 = vmatpush1.msra.mxu0 0.0
    %1372 = vmatprep.subr.mxu0 0.0
    %1373 = vmatpush1.msra.mxu0 0.0
    %1374 = vmatprep.subr.mxu0 0.0
    %1375 = vmatpush1.msra.mxu0 0.0
    %1376 = vmatprep.subr.mxu0 0.0
    %1377 = vmatpush1.msra.mxu0 0.0
    %1378 = vmatprep.subr.mxu0 0.0
    %1379 = vmatpush1.msra.mxu0 0.0
    %1380 = vmatprep.subr.mxu0 0.0
    %1381 = vmatpush1.msra.mxu0 0.0
    %1382 = vmatprep.subr.mxu0 0.0
    %1383 = vmatpush1.msra.mxu0 0.0
    %1384 = vmatprep.subr.mxu0 0.0
    %1385 = vmatpush1.msra.mxu0 0.0
    %1386 = vmatprep.subr.mxu0 0.0
    %1387 = vmatpush1.msra.mxu0 0.0
    %1388 = vmatprep.subr.mxu0 0.0
    %1389 = vmatpush1.msra.mxu0 0.0
    %1390 = vmatprep.subr.mxu0 0.0
    %1391 = vmatpush1.msra.mxu0 0.0
    %1392 = vmatprep.subr.mxu0 0.0
    %1393 = vmatpush1.msra.mxu0 0.0
    %1394 = vmatprep.subr.mxu0 0.0
    %1395 = vmatpush1.msra.mxu0 0.0
    %1396 = vmatprep.subr.mxu0 0.0
    %1397 = vmatpush1.msra.mxu0 0.0
    %1398 = vmatprep.subr.mxu0 0.0
    %1399 = vmatpush1.msra.mxu0 0.0
    %1400 = vmatprep.subr.mxu0 0.0
    %1401 = vmatpush1.msra.mxu0 0.0
    %1402 = vmatprep.subr.mxu0 0.0
    %1403 = vmatpush1.msra.mxu0 0.0
    %1404 = vmatprep.subr.mxu0 0.0
    %1405 = vmatpush1.msra.mxu0 0.0
    %1406 = vmatprep.subr.mxu0 0.0
    %1407 = vmatpush1.msra.mxu0 0.0
    %1408 = vmatprep.subr.mxu0 0.0
    %1409 = vmatpush1.msra.mxu0 0.0
    %1410 = vmatprep.subr.mxu0 0.0
    %1411 = vmatpush1.msra.mxu0 0.0
    %1412 = vmatprep.subr.mxu0 0.0
    %1413 = vmatpush1.msra.mxu0 0.0
    %1414 = vmatprep.subr.mxu0 0.0
    %1415 = vmatpush1.msra.mxu0 0.0
    %1416 = vmatprep.mubr.f32.mxu0 0.0
    %1417 = vmatmul.mubr.f32.gmra.mrb[0].mxu0 %v1350
    %v1418 = vpop.f32.mrb[0].mxu0
    %v1419 = vadd.f32 0.0, %v1418
    %v1420 = vpop.f32.mrb[0].mxu0
    %1421 = vdwg.mxu0
    %v1422 = vadd.f32 %v1270, %v1419
    %v1423 = vadd.f32 %v1422, %v271
    %v1424 = vtanh.pop %v1423
    %vm1425 = vcmask 64512
    %1426 = vst.msk [vmem:[#allocation2] sm:$0xff] %vm1425, %v1424
    // Predicated region
    $region30: #{tpu_custom_call.1} parent=1 // pred_check
      _
    $region31: #{tpu_custom_call.1} parent=1 // pred_check_branch
      %1428 = sbr.rel (0) target = $region33
    $region32: #{tpu_custom_call.1} parent=1 // pred_region
      %s1430 = ssub.s32 128, 128
      %1431 = vsyncadd [#allocation3], %s1430
      %s1433 = sshll.u32 [#allocation2], 4
      %s1434 = int_to_ptr.vmem [resolvable:$true] %s1433
      %1436 = dma.vmem_to_hbm [thread:$0]  %s1434, 128, %s7, [#allocation3]
    $region33: #{tpu_custom_call.1} parent=1 // pred_fallthru
      _
    // Predicated region
    $region34: #{tpu_custom_call.1} parent=1 // pred_check
      _
    $region35: #{tpu_custom_call.1} parent=1 // pred_check_branch
      %1438 = sbr.rel (0) target = $region37
    $region36: #{tpu_custom_call.1} parent=1 // pred_region
      %1439 = dma.done [#allocation3], 128
    $region37: #{tpu_custom_call.1} parent=1 // pred_fallthru
      _
    %1440 = vsyncpa [#allocation3], 1

</llo_original>
